<compile_context>
chip_gen: v6e
topology: v6e:2x2x1
jax: 0.10.0
libtpu: 0.0.40
codegen_flags: <defaults>
</compile_context>

<pallas_src>
import functools

import jax
import jax.numpy as jnp
from jax.experimental import pallas as pl
from jax.experimental.pallas import tpu as pltpu


# ---------------------------------------------------------------------------
# Helpers
# ---------------------------------------------------------------------------
def _round_up(x, m):
    return (x + m - 1) // m * m


def _pick_tile(dim, candidates):
    for c in candidates:
        if dim % c == 0:
            return c
    return dim  # fallback: full extent (always divides itself)


def _conv_out_hw(h, w):
    def sz(s, k, st):
        return (s - k) // st + 1
    return (sz(sz(sz(h, 8, 4), 4, 2), 3, 1),
            sz(sz(sz(w, 8, 4), 4, 2), 3, 1))


# ---------------------------------------------------------------------------
# Pallas kernel: Y = relu?(X @ W + b), K-axis accumulation in f32 scratch
# ---------------------------------------------------------------------------
def _matmul_bias_act_kernel(x_ref, w_ref, b_ref, o_ref, acc_ref, *, apply_relu):
    @pl.when(pl.program_id(2) == 0)
    def _():
        acc_ref[...] = jnp.zeros_like(acc_ref)

    acc_ref[...] += jnp.dot(x_ref[...], w_ref[...],
                            preferred_element_type=jnp.float32)

    @pl.when(pl.program_id(2) == pl.num_programs(2) - 1)
    def _():
        y = acc_ref[...] + b_ref[...]          # (1, tn) bias broadcasts over rows
        if apply_relu:
            y = jnp.maximum(y, 0.0)
        o_ref[...] = y.astype(o_ref.dtype)


def pallas_matmul_bias_act(x, w, b, *, apply_relu, out_dtype=jnp.bfloat16):
    """x: (M, K) float; w: (K_pad, N_pad) bf16 (pre-padded, K_pad >= K);
    b: (1, N_pad) f32.  Returns (M, N_pad) in out_dtype."""
    M, K = x.shape
    K_pad, N_pad = w.shape
    assert K_pad >= K and b.shape == (1, N_pad)

    # Pad the activation rows to a sublane multiple and cols to the weight's K.
    M_pad = _round_up(max(M, 8), 8)
    x = x.astype(jnp.bfloat16)
    if (M_pad, K_pad) != (M, K):
        x = jnp.pad(x, ((0, M_pad - M), (0, K_pad - K)))

    # Tile sizes: lane/sublane aligned, sized well below scoped VMEM on every
    # generation (max block set is a couple of MiB even double-buffered).
    tm = _pick_tile(M_pad, (256, 128, 64, 32, 16, 8))
    tk = _pick_tile(K_pad, (512, 256, 128)) if K_pad % 128 == 0 else K_pad
    tn = _pick_tile(N_pad, (256, 128)) if N_pad % 128 == 0 else N_pad

    grid = (M_pad // tm, N_pad // tn, K_pad // tk)

    out = pl.pallas_call(
        functools.partial(_matmul_bias_act_kernel, apply_relu=apply_relu),
        out_shape=jax.ShapeDtypeStruct((M_pad, N_pad), out_dtype),
        grid_spec=pltpu.PrefetchScalarGridSpec(
            num_scalar_prefetch=0,
            grid=grid,
            in_specs=[
                pl.BlockSpec((tm, tk), lambda i, j, k: (i, k)),
                pl.BlockSpec((tk, tn), lambda i, j, k: (k, j)),
                pl.BlockSpec((1, tn), lambda i, j, k: (0, j)),
            ],
            out_specs=pl.BlockSpec((tm, tn), lambda i, j, k: (i, j)),
            scratch_shapes=[pltpu.VMEM((tm, tn), jnp.float32)],
        ),
        compiler_params=pltpu.CompilerParams(
            dimension_semantics=("parallel", "parallel", "arbitrary"),
            vmem_limit_bytes=32 * 1024 * 1024,
        ),
    )(x, w, b)

    return out[:M] if M_pad != M else out


# ---------------------------------------------------------------------------
# Conv2d+ReLU (channel-last), im2col glue feeding the Pallas matmul kernel
# ---------------------------------------------------------------------------
def conv2d_relu_nhwc(x, w_kc_o, b, *, kh, kw, stride):
    """x: (B, H, W, C); w_kc_o: (K_pad, O) bf16 with valid rows in (i, j, c) order;
    b: (1, O) f32.  Returns (B, oh, ow, O) bf16 (channel-last, no relayout back)."""
    B, H, W, C = x.shape
    oh = (H - kh) // stride + 1
    ow = (W - kw) // stride + 1
    # im2col emitted directly in (B*oh*ow, kh*kw*C) channel-last layout.
    patches = [
        x[:, i:i + stride * oh:stride, j:j + stride * ow:stride, :]
        for i in range(kh) for j in range(kw)
    ]
    col = jnp.stack(patches, axis=3).reshape(B * oh * ow, kh * kw * C)
    # TODO(synk): fuse this gather into the matmul kernel's input pipeline
    # (PrefetchScalarGridSpec row-offset prefetch) to avoid materializing `col` in HBM.
    y = pallas_matmul_bias_act(col, w_kc_o, b, apply_relu=True,
                               out_dtype=jnp.bfloat16)
    return y.reshape(B, oh, ow, w_kc_o.shape[1])


# ---------------------------------------------------------------------------
# Parameter init (PyTorch layout) + one-time re-layout for the kernels
# ---------------------------------------------------------------------------
def init_torch_layout_params(key, input_shape, num_actions):
    c, h, w = input_shape
    oh, ow = _conv_out_hw(h, w)
    conv_out = oh * ow * 64
    keys = jax.random.split(key, 10)

    def unif(k, shape, fan_in):
        bound = 1.0 / jnp.sqrt(jnp.float32(fan_in))
        return jax.random.uniform(k, shape, jnp.float32, -bound, bound)

    return {
        "conv1_w": unif(keys[0], (32, c, 8, 8), c * 64),
        "conv1_b": unif(keys[1], (32,), c * 64),
        "conv2_w": unif(keys[2], (64, 32, 4, 4), 32 * 16),
        "conv2_b": unif(keys[3], (64,), 32 * 16),
        "conv3_w": unif(keys[4], (64, 64, 3, 3), 64 * 9),
        "conv3_b": unif(keys[5], (64,), 64 * 9),
        "fc1_w": unif(keys[6], (512, conv_out), conv_out),   # PyTorch (out, in)
        "fc1_b": unif(keys[7], (512,), conv_out),
        "fc2_w": unif(keys[8], (num_actions, 512), 512),
        "fc2_b": unif(keys[9], (num_actions,), 512),
    }


def prepare_params(tp, input_shape, num_actions):
    """One-time (outside the hot path) re-layout of PyTorch-shaped weights into
    the (K, N) bf16, lane/sublane-padded layout the Pallas kernel consumes."""
    _, h, w = input_shape
    oh, ow = _conv_out_hw(h, w)
    params = {}

    def prep_conv(w_oihw, b_o):
        O, C, kh, kw = w_oihw.shape
        # (O, C, kh, kw) -> (kh, kw, C, O): matches channel-last im2col (i, j, c) cols.
        wk = jnp.transpose(w_oihw, (2, 3, 1, 0)).reshape(kh * kw * C, O)
        kpad = _round_up(wk.shape[0], 128)
        wk = jnp.pad(wk, ((0, kpad - wk.shape[0]), (0, 0)))
        return wk.astype(jnp.bfloat16), b_o.reshape(1, O).astype(jnp.float32)

    params["conv1_w"], params["conv1_b"] = prep_conv(tp["conv1_w"], tp["conv1_b"])
    params["conv2_w"], params["conv2_b"] = prep_conv(tp["conv2_w"], tp["conv2_b"])
    params["conv3_w"], params["conv3_b"] = prep_conv(tp["conv3_w"], tp["conv3_b"])

    # fc1: PyTorch flatten order is (c, i, j); ours is channel-last (i, j, c).
    fc1 = tp["fc1_w"].reshape(512, 64, oh, ow)
    fc1 = jnp.transpose(fc1, (2, 3, 1, 0)).reshape(oh * ow * 64, 512)
    k1 = _round_up(fc1.shape[0], 128)
    fc1 = jnp.pad(fc1, ((0, k1 - fc1.shape[0]), (0, 0)))
    params["fc1_w"] = fc1.astype(jnp.bfloat16)
    params["fc1_b"] = tp["fc1_b"].reshape(1, 512).astype(jnp.float32)

    # fc2: pad the tiny num_actions output to 128 lanes (lane-dense stores);
    # the forward slices the Q-values back to num_actions.
    n_pad = _round_up(max(num_actions, 128), 128)
    fc2 = jnp.pad(tp["fc2_w"].T, ((0, 0), (0, n_pad - num_actions)))   # (512, n_pad)
    params["fc2_w"] = fc2.astype(jnp.bfloat16)
    params["fc2_b"] = jnp.pad(tp["fc2_b"], (0, n_pad - num_actions)
                              ).reshape(1, n_pad).astype(jnp.float32)
    return params


# ---------------------------------------------------------------------------
# DQNetwork forward
# ---------------------------------------------------------------------------
def make_dqn_forward(num_actions):
    @jax.jit
    def forward(params, x):
        # x: (B, C, H, W) f32 NCHW, same as the PyTorch module.  One relayout to
        # channel-last here; activations stay channel-last for the whole net.
        x = jnp.transpose(x, (0, 2, 3, 1))
        x = conv2d_relu_nhwc(x, params["conv1_w"], params["conv1_b"],
                             kh=8, kw=8, stride=4)
        x = conv2d_relu_nhwc(x, params["conv2_w"], params["conv2_b"],
                             kh=4, kw=4, stride=2)
        x = conv2d_relu_nhwc(x, params["conv3_w"], params["conv3_b"],
                             kh=3, kw=3, stride=1)
        B = x.shape[0]
        x = x.reshape(B, -1)   # (B, oh*ow*64) in (h, w, c) order; fc1_w pre-permuted to match
        x = pallas_matmul_bias_act(x, params["fc1_w"], params["fc1_b"],
                                   apply_relu=True, out_dtype=jnp.bfloat16)
        q = pallas_matmul_bias_act(x, params["fc2_w"], params["fc2_b"],
                                   apply_relu=False, out_dtype=jnp.float32)
        return q[:, :num_actions]
    return forward


if __name__ == "__main__":
    # Smallest spatial size surviving the three convs: 36 -> 8 -> 3 -> 1.
    batch, channels, height, width = 2, 4, 36, 36
    num_actions = 6

    key = jax.random.PRNGKey(0)
    pkey, xkey = jax.random.split(key)
    torch_params = init_torch_layout_params(pkey, (channels, height, width), num_actions)
    params = prepare_params(torch_params, (channels, height, width), num_actions)
    x = jax.random.normal(xkey, (batch, channels, height, width), jnp.float32)

    forward = make_dqn_forward(num_actions)
    q_values = forward(params, x)
    jax.block_until_ready(q_values)
    assert q_values.shape == (batch, num_actions)
    print("KERNEL_OK")
</pallas_src>

<mosaic_0001>
module attributes {stable_mosaic.version = 11 : i64} {
  func.func @_matmul_bias_act_kernel(%arg0: i32, %arg1: i32, %arg2: i32, %arg3: memref<128x256xbf16, #tpu.memory_space<vmem>>, %arg4: memref<256x32xbf16, #tpu.memory_space<vmem>>, %arg5: memref<1x32xf32, #tpu.memory_space<vmem>>, %arg6: memref<128x32xbf16, #tpu.memory_space<vmem>>, %arg7: memref<128x32xf32, #tpu.memory_space<vmem>>) attributes {dimension_semantics = [#tpu.dimension_semantics<parallel>, #tpu.dimension_semantics<parallel>, #tpu.dimension_semantics<arbitrary>], iteration_bounds = array<i64: 1, 1, 1>, scalar_prefetch = 0 : i64, scratch_operands = 1 : i64, tpu.core_type = #tpu.core_type<tc>, window_params = [{transform_indices = @transform_0, window_bounds = array<i64: 128, 256>}, {transform_indices = @transform_1, window_bounds = array<i64: 256, 32>}, {transform_indices = @transform_2, window_bounds = array<i64: 1, 32>}, {transform_indices = @transform_3, window_bounds = array<i64: 128, 32>}]} {
    %c0_i32 = arith.constant 0 : i32
    %0 = arith.cmpi eq, %arg2, %c0_i32 : i32
    %1 = arith.extui %0 : i1 to i32
    %c0_i32_0 = arith.constant 0 : i32
    %2 = arith.cmpi ne, %1, %c0_i32_0 : i32
    scf.if %2 {
      %cst_10 = arith.constant 0.000000e+00 : f32
      %12 = vector.broadcast %cst_10 : f32 to vector<128x32xf32>
      %c0_11 = arith.constant 0 : index
      %c0_12 = arith.constant 0 : index
      %13 = vector.load %arg7[%c0_11, %c0_12] : memref<128x32xf32, #tpu.memory_space<vmem>>, vector<128x32xf32>
      tpu.vector_store %arg7[%c0_11, %c0_12], %12 {strides = array<i32>} : memref<128x32xf32, #tpu.memory_space<vmem>>, vector<128x32xf32>,
    } else {
    }
    %c0 = arith.constant 0 : index
    %c0_1 = arith.constant 0 : index
    %3 = vector.load %arg7[%c0, %c0_1] : memref<128x32xf32, #tpu.memory_space<vmem>>, vector<128x32xf32>
    %c0_2 = arith.constant 0 : index
    %c0_3 = arith.constant 0 : index
    %4 = vector.load %arg3[%c0_2, %c0_3] : memref<128x256xbf16, #tpu.memory_space<vmem>>, vector<128x256xbf16>
    %c0_4 = arith.constant 0 : index
    %c0_5 = arith.constant 0 : index
    %5 = vector.load %arg4[%c0_4, %c0_5] : memref<256x32xbf16, #tpu.memory_space<vmem>>, vector<256x32xbf16>
    %cst = arith.constant dense<0.000000e+00> : vector<128x32xf32>
    %6 = tpu.matmul %4, %5, %cst {dimension_numbers = #tpu.dot_dimension_numbers<[1], [0], [0], [1], [0, 0, 1, 1], [], []>} : vector<128x256xbf16>, vector<256x32xbf16>, vector<128x32xf32> -> vector<128x32xf32>
    %7 = arith.addf %3, %6 : vector<128x32xf32>
    %c0_6 = arith.constant 0 : index
    %c0_7 = arith.constant 0 : index
    %8 = vector.load %arg7[%c0_6, %c0_7] : memref<128x32xf32, #tpu.memory_space<vmem>>, vector<128x32xf32>
    tpu.vector_store %arg7[%c0_6, %c0_7], %7 {strides = array<i32>} : memref<128x32xf32, #tpu.memory_space<vmem>>, vector<128x32xf32>,
    %c0_i32_8 = arith.constant 0 : i32
    %9 = arith.cmpi eq, %arg2, %c0_i32_8 : i32
    %10 = arith.extui %9 : i1 to i32
    %c0_i32_9 = arith.constant 0 : i32
    %11 = arith.cmpi ne, %10, %c0_i32_9 : i32
    scf.if %11 {
      %c0_10 = arith.constant 0 : index
      %c0_11 = arith.constant 0 : index
      %12 = vector.load %arg7[%c0_10, %c0_11] : memref<128x32xf32, #tpu.memory_space<vmem>>, vector<128x32xf32>
      %c0_12 = arith.constant 0 : index
      %c0_13 = arith.constant 0 : index
      %13 = vector.load %arg5[%c0_12, %c0_13] : memref<1x32xf32, #tpu.memory_space<vmem>>, vector<1x32xf32>
      %14 = vector.broadcast %13 : vector<1x32xf32> to vector<128x32xf32>
      %15 = arith.addf %12, %14 : vector<128x32xf32>
      %cst_14 = arith.constant 0.000000e+00 : f32
      %16 = vector.broadcast %cst_14 : f32 to vector<128x32xf32>
      %17 = arith.maximumf %15, %16 : vector<128x32xf32>
      %18 = arith.truncf %17 : vector<128x32xf32> to vector<128x32xbf16>
      %c0_15 = arith.constant 0 : index
      %c0_16 = arith.constant 0 : index
      %19 = vector.load %arg6[%c0_15, %c0_16] : memref<128x32xbf16, #tpu.memory_space<vmem>>, vector<128x32xbf16>
      tpu.vector_store %arg6[%c0_15, %c0_16], %18 {strides = array<i32>} : memref<128x32xbf16, #tpu.memory_space<vmem>>, vector<128x32xbf16>,
    } else {
    }
    return
  }
  func.func @transform_0(%arg0: i32, %arg1: i32, %arg2: i32) -> (i32, i32) {
    %c0_i32 = arith.constant 0 : i32
    return %arg0, %arg2 : i32, i32
  }
  func.func @transform_1(%arg0: i32, %arg1: i32, %arg2: i32) -> (i32, i32) {
    %c0_i32 = arith.constant 0 : i32
    return %arg2, %arg1 : i32, i32
  }
  func.func @transform_2(%arg0: i32, %arg1: i32, %arg2: i32) -> (i32, i32) {
    %c0_i32 = arith.constant 0 : i32
    %c0_i32_0 = arith.constant 0 : i32
    return %c0_i32, %arg1 : i32, i32
  }
  func.func @transform_3(%arg0: i32, %arg1: i32, %arg2: i32) -> (i32, i32) {
    %c0_i32 = arith.constant 0 : i32
    return %arg0, %arg1 : i32, i32
  }
}

module attributes {stable_mosaic.version = 11 : i64} {
  func.func @_matmul_bias_act_kernel(%arg0: i32, %arg1: i32, %arg2: i32, %arg3: memref<8x512xbf16, #tpu.memory_space<vmem>>, %arg4: memref<512x64xbf16, #tpu.memory_space<vmem>>, %arg5: memref<1x64xf32, #tpu.memory_space<vmem>>, %arg6: memref<8x64xbf16, #tpu.memory_space<vmem>>, %arg7: memref<8x64xf32, #tpu.memory_space<vmem>>) attributes {dimension_semantics = [#tpu.dimension_semantics<parallel>, #tpu.dimension_semantics<parallel>, #tpu.dimension_semantics<arbitrary>], iteration_bounds = array<i64: 3, 1, 1>, scalar_prefetch = 0 : i64, scratch_operands = 1 : i64, tpu.core_type = #tpu.core_type<tc>, window_params = [{transform_indices = @transform_0, window_bounds = array<i64: 8, 512>}, {transform_indices = @transform_1, window_bounds = array<i64: 512, 64>}, {transform_indices = @transform_2, window_bounds = array<i64: 1, 64>}, {transform_indices = @transform_3, window_bounds = array<i64: 8, 64>}]} {
    %c0_i32 = arith.constant 0 : i32
    %0 = arith.cmpi eq, %arg2, %c0_i32 : i32
    %1 = arith.extui %0 : i1 to i32
    %c0_i32_0 = arith.constant 0 : i32
    %2 = arith.cmpi ne, %1, %c0_i32_0 : i32
    scf.if %2 {
      %cst_10 = arith.constant 0.000000e+00 : f32
      %12 = vector.broadcast %cst_10 : f32 to vector<8x64xf32>
      %c0_11 = arith.constant 0 : index
      %c0_12 = arith.constant 0 : index
      %13 = vector.load %arg7[%c0_11, %c0_12] : memref<8x64xf32, #tpu.memory_space<vmem>>, vector<8x64xf32>
      tpu.vector_store %arg7[%c0_11, %c0_12], %12 {strides = array<i32>} : memref<8x64xf32, #tpu.memory_space<vmem>>, vector<8x64xf32>,
    } else {
    }
    %c0 = arith.constant 0 : index
    %c0_1 = arith.constant 0 : index
    %3 = vector.load %arg7[%c0, %c0_1] : memref<8x64xf32, #tpu.memory_space<vmem>>, vector<8x64xf32>
    %c0_2 = arith.constant 0 : index
    %c0_3 = arith.constant 0 : index
    %4 = vector.load %arg3[%c0_2, %c0_3] : memref<8x512xbf16, #tpu.memory_space<vmem>>, vector<8x512xbf16>
    %c0_4 = arith.constant 0 : index
    %c0_5 = arith.constant 0 : index
    %5 = vector.load %arg4[%c0_4, %c0_5] : memref<512x64xbf16, #tpu.memory_space<vmem>>, vector<512x64xbf16>
    %cst = arith.constant dense<0.000000e+00> : vector<8x64xf32>
    %6 = tpu.matmul %4, %5, %cst {dimension_numbers = #tpu.dot_dimension_numbers<[1], [0], [0], [1], [0, 0, 1, 1], [], []>} : vector<8x512xbf16>, vector<512x64xbf16>, vector<8x64xf32> -> vector<8x64xf32>
    %7 = arith.addf %3, %6 : vector<8x64xf32>
    %c0_6 = arith.constant 0 : index
    %c0_7 = arith.constant 0 : index
    %8 = vector.load %arg7[%c0_6, %c0_7] : memref<8x64xf32, #tpu.memory_space<vmem>>, vector<8x64xf32>
    tpu.vector_store %arg7[%c0_6, %c0_7], %7 {strides = array<i32>} : memref<8x64xf32, #tpu.memory_space<vmem>>, vector<8x64xf32>,
    %c0_i32_8 = arith.constant 0 : i32
    %9 = arith.cmpi eq, %arg2, %c0_i32_8 : i32
    %10 = arith.extui %9 : i1 to i32
    %c0_i32_9 = arith.constant 0 : i32
    %11 = arith.cmpi ne, %10, %c0_i32_9 : i32
    scf.if %11 {
      %c0_10 = arith.constant 0 : index
      %c0_11 = arith.constant 0 : index
      %12 = vector.load %arg7[%c0_10, %c0_11] : memref<8x64xf32, #tpu.memory_space<vmem>>, vector<8x64xf32>
      %c0_12 = arith.constant 0 : index
      %c0_13 = arith.constant 0 : index
      %13 = vector.load %arg5[%c0_12, %c0_13] : memref<1x64xf32, #tpu.memory_space<vmem>>, vector<1x64xf32>
      %14 = vector.broadcast %13 : vector<1x64xf32> to vector<8x64xf32>
      %15 = arith.addf %12, %14 : vector<8x64xf32>
      %cst_14 = arith.constant 0.000000e+00 : f32
      %16 = vector.broadcast %cst_14 : f32 to vector<8x64xf32>
      %17 = arith.maximumf %15, %16 : vector<8x64xf32>
      %18 = arith.truncf %17 : vector<8x64xf32> to vector<8x64xbf16>
      %c0_15 = arith.constant 0 : index
      %c0_16 = arith.constant 0 : index
      %19 = vector.load %arg6[%c0_15, %c0_16] : memref<8x64xbf16, #tpu.memory_space<vmem>>, vector<8x64xbf16>
      tpu.vector_store %arg6[%c0_15, %c0_16], %18 {strides = array<i32>} : memref<8x64xbf16, #tpu.memory_space<vmem>>, vector<8x64xbf16>,
    } else {
    }
    return
  }
  func.func @transform_0(%arg0: i32, %arg1: i32, %arg2: i32) -> (i32, i32) {
    %c0_i32 = arith.constant 0 : i32
    return %arg0, %arg2 : i32, i32
  }
  func.func @transform_1(%arg0: i32, %arg1: i32, %arg2: i32) -> (i32, i32) {
    %c0_i32 = arith.constant 0 : i32
    return %arg2, %arg1 : i32, i32
  }
  func.func @transform_2(%arg0: i32, %arg1: i32, %arg2: i32) -> (i32, i32) {
    %c0_i32 = arith.constant 0 : i32
    %c0_i32_0 = arith.constant 0 : i32
    return %c0_i32, %arg1 : i32, i32
  }
  func.func @transform_3(%arg0: i32, %arg1: i32, %arg2: i32) -> (i32, i32) {
    %c0_i32 = arith.constant 0 : i32
    return %arg0, %arg1 : i32, i32
  }
}

module attributes {stable_mosaic.version = 11 : i64} {
  func.func @_matmul_bias_act_kernel(%arg0: i32, %arg1: i32, %arg2: i32, %arg3: memref<8x128xbf16, #tpu.memory_space<vmem>>, %arg4: memref<128x64xbf16, #tpu.memory_space<vmem>>, %arg5: memref<1x64xf32, #tpu.memory_space<vmem>>, %arg6: memref<8x64xbf16, #tpu.memory_space<vmem>>, %arg7: memref<8x64xf32, #tpu.memory_space<vmem>>) attributes {dimension_semantics = [#tpu.dimension_semantics<parallel>, #tpu.dimension_semantics<parallel>, #tpu.dimension_semantics<arbitrary>], iteration_bounds = array<i64: 1, 1, 5>, scalar_prefetch = 0 : i64, scratch_operands = 1 : i64, tpu.core_type = #tpu.core_type<tc>, window_params = [{transform_indices = @transform_0, window_bounds = array<i64: 8, 128>}, {transform_indices = @transform_1, window_bounds = array<i64: 128, 64>}, {transform_indices = @transform_2, window_bounds = array<i64: 1, 64>}, {transform_indices = @transform_3, window_bounds = array<i64: 8, 64>}]} {
    %c0_i32 = arith.constant 0 : i32
    %0 = arith.cmpi eq, %arg2, %c0_i32 : i32
    %1 = arith.extui %0 : i1 to i32
    %c0_i32_0 = arith.constant 0 : i32
    %2 = arith.cmpi ne, %1, %c0_i32_0 : i32
    scf.if %2 {
      %cst_9 = arith.constant 0.000000e+00 : f32
      %12 = vector.broadcast %cst_9 : f32 to vector<8x64xf32>
      %c0_10 = arith.constant 0 : index
      %c0_11 = arith.constant 0 : index
      %13 = vector.load %arg7[%c0_10, %c0_11] : memref<8x64xf32, #tpu.memory_space<vmem>>, vector<8x64xf32>
      tpu.vector_store %arg7[%c0_10, %c0_11], %12 {strides = array<i32>} : memref<8x64xf32, #tpu.memory_space<vmem>>, vector<8x64xf32>,
    } else {
    }
    %c0 = arith.constant 0 : index
    %c0_1 = arith.constant 0 : index
    %3 = vector.load %arg7[%c0, %c0_1] : memref<8x64xf32, #tpu.memory_space<vmem>>, vector<8x64xf32>
    %c0_2 = arith.constant 0 : index
    %c0_3 = arith.constant 0 : index
    %4 = vector.load %arg3[%c0_2, %c0_3] : memref<8x128xbf16, #tpu.memory_space<vmem>>, vector<8x128xbf16>
    %c0_4 = arith.constant 0 : index
    %c0_5 = arith.constant 0 : index
    %5 = vector.load %arg4[%c0_4, %c0_5] : memref<128x64xbf16, #tpu.memory_space<vmem>>, vector<128x64xbf16>
    %cst = arith.constant dense<0.000000e+00> : vector<8x64xf32>
    %6 = tpu.matmul %4, %5, %cst {dimension_numbers = #tpu.dot_dimension_numbers<[1], [0], [0], [1], [0, 0, 1, 1], [], []>} : vector<8x128xbf16>, vector<128x64xbf16>, vector<8x64xf32> -> vector<8x64xf32>
    %7 = arith.addf %3, %6 : vector<8x64xf32>
    %c0_6 = arith.constant 0 : index
    %c0_7 = arith.constant 0 : index
    %8 = vector.load %arg7[%c0_6, %c0_7] : memref<8x64xf32, #tpu.memory_space<vmem>>, vector<8x64xf32>
    tpu.vector_store %arg7[%c0_6, %c0_7], %7 {strides = array<i32>} : memref<8x64xf32, #tpu.memory_space<vmem>>, vector<8x64xf32>,
    %c4_i32 = arith.constant 4 : i32
    %9 = arith.cmpi eq, %arg2, %c4_i32 : i32
    %10 = arith.extui %9 : i1 to i32
    %c0_i32_8 = arith.constant 0 : i32
    %11 = arith.cmpi ne, %10, %c0_i32_8 : i32
    scf.if %11 {
      %c0_9 = arith.constant 0 : index
      %c0_10 = arith.constant 0 : index
      %12 = vector.load %arg7[%c0_9, %c0_10] : memref<8x64xf32, #tpu.memory_space<vmem>>, vector<8x64xf32>
      %c0_11 = arith.constant 0 : index
      %c0_12 = arith.constant 0 : index
      %13 = vector.load %arg5[%c0_11, %c0_12] : memref<1x64xf32, #tpu.memory_space<vmem>>, vector<1x64xf32>
      %14 = vector.broadcast %13 : vector<1x64xf32> to vector<8x64xf32>
      %15 = arith.addf %12, %14 : vector<8x64xf32>
      %cst_13 = arith.constant 0.000000e+00 : f32
      %16 = vector.broadcast %cst_13 : f32 to vector<8x64xf32>
      %17 = arith.maximumf %15, %16 : vector<8x64xf32>
      %18 = arith.truncf %17 : vector<8x64xf32> to vector<8x64xbf16>
      %c0_14 = arith.constant 0 : index
      %c0_15 = arith.constant 0 : index
      %19 = vector.load %arg6[%c0_14, %c0_15] : memref<8x64xbf16, #tpu.memory_space<vmem>>, vector<8x64xbf16>
      tpu.vector_store %arg6[%c0_14, %c0_15], %18 {strides = array<i32>} : memref<8x64xbf16, #tpu.memory_space<vmem>>, vector<8x64xbf16>,
    } else {
    }
    return
  }
  func.func @transform_0(%arg0: i32, %arg1: i32, %arg2: i32) -> (i32, i32) {
    %c0_i32 = arith.constant 0 : i32
    return %arg0, %arg2 : i32, i32
  }
  func.func @transform_1(%arg0: i32, %arg1: i32, %arg2: i32) -> (i32, i32) {
    %c0_i32 = arith.constant 0 : i32
    return %arg2, %arg1 : i32, i32
  }
  func.func @transform_2(%arg0: i32, %arg1: i32, %arg2: i32) -> (i32, i32) {
    %c0_i32 = arith.constant 0 : i32
    %c0_i32_0 = arith.constant 0 : i32
    return %c0_i32, %arg1 : i32, i32
  }
  func.func @transform_3(%arg0: i32, %arg1: i32, %arg2: i32) -> (i32, i32) {
    %c0_i32 = arith.constant 0 : i32
    return %arg0, %arg1 : i32, i32
  }
}

module attributes {stable_mosaic.version = 11 : i64} {
  func.func @_matmul_bias_act_kernel(%arg0: i32, %arg1: i32, %arg2: i32, %arg3: memref<8x512xbf16, #tpu.memory_space<vmem>>, %arg4: memref<512x128xbf16, #tpu.memory_space<vmem>>, %arg5: memref<1x128xf32, #tpu.memory_space<vmem>>, %arg6: memref<8x128xf32, #tpu.memory_space<vmem>>, %arg7: memref<8x128xf32, #tpu.memory_space<vmem>>) attributes {dimension_semantics = [#tpu.dimension_semantics<parallel>, #tpu.dimension_semantics<parallel>, #tpu.dimension_semantics<arbitrary>], iteration_bounds = array<i64: 1, 1, 1>, scalar_prefetch = 0 : i64, scratch_operands = 1 : i64, tpu.core_type = #tpu.core_type<tc>, window_params = [{transform_indices = @transform_0, window_bounds = array<i64: 8, 512>}, {transform_indices = @transform_1, window_bounds = array<i64: 512, 128>}, {transform_indices = @transform_2, window_bounds = array<i64: 1, 128>}, {transform_indices = @transform_3, window_bounds = array<i64: 8, 128>}]} {
    %c0_i32 = arith.constant 0 : i32
    %0 = arith.cmpi eq, %arg2, %c0_i32 : i32
    %1 = arith.extui %0 : i1 to i32
    %c0_i32_0 = arith.constant 0 : i32
    %2 = arith.cmpi ne, %1, %c0_i32_0 : i32
    scf.if %2 {
      %cst_10 = arith.constant 0.000000e+00 : f32
      %12 = vector.broadcast %cst_10 : f32 to vector<8x128xf32>
      %c0_11 = arith.constant 0 : index
      %c0_12 = arith.constant 0 : index
      %13 = vector.load %arg7[%c0_11, %c0_12] : memref<8x128xf32, #tpu.memory_space<vmem>>, vector<8x128xf32>
      tpu.vector_store %arg7[%c0_11, %c0_12], %12 {strides = array<i32>} : memref<8x128xf32, #tpu.memory_space<vmem>>, vector<8x128xf32>,
    } else {
    }
    %c0 = arith.constant 0 : index
    %c0_1 = arith.constant 0 : index
    %3 = vector.load %arg7[%c0, %c0_1] : memref<8x128xf32, #tpu.memory_space<vmem>>, vector<8x128xf32>
    %c0_2 = arith.constant 0 : index
    %c0_3 = arith.constant 0 : index
    %4 = vector.load %arg3[%c0_2, %c0_3] : memref<8x512xbf16, #tpu.memory_space<vmem>>, vector<8x512xbf16>
    %c0_4 = arith.constant 0 : index
    %c0_5 = arith.constant 0 : index
    %5 = vector.load %arg4[%c0_4, %c0_5] : memref<512x128xbf16, #tpu.memory_space<vmem>>, vector<512x128xbf16>
    %cst = arith.constant dense<0.000000e+00> : vector<8x128xf32>
    %6 = tpu.matmul %4, %5, %cst {dimension_numbers = #tpu.dot_dimension_numbers<[1], [0], [0], [1], [0, 0, 1, 1], [], []>} : vector<8x512xbf16>, vector<512x128xbf16>, vector<8x128xf32> -> vector<8x128xf32>
    %7 = arith.addf %3, %6 : vector<8x128xf32>
    %c0_6 = arith.constant 0 : index
    %c0_7 = arith.constant 0 : index
    %8 = vector.load %arg7[%c0_6, %c0_7] : memref<8x128xf32, #tpu.memory_space<vmem>>, vector<8x128xf32>
    tpu.vector_store %arg7[%c0_6, %c0_7], %7 {strides = array<i32>} : memref<8x128xf32, #tpu.memory_space<vmem>>, vector<8x128xf32>,
    %c0_i32_8 = arith.constant 0 : i32
    %9 = arith.cmpi eq, %arg2, %c0_i32_8 : i32
    %10 = arith.extui %9 : i1 to i32
    %c0_i32_9 = arith.constant 0 : i32
    %11 = arith.cmpi ne, %10, %c0_i32_9 : i32
    scf.if %11 {
      %c0_10 = arith.constant 0 : index
      %c0_11 = arith.constant 0 : index
      %12 = vector.load %arg7[%c0_10, %c0_11] : memref<8x128xf32, #tpu.memory_space<vmem>>, vector<8x128xf32>
      %c0_12 = arith.constant 0 : index
      %c0_13 = arith.constant 0 : index
      %13 = vector.load %arg5[%c0_12, %c0_13] : memref<1x128xf32, #tpu.memory_space<vmem>>, vector<1x128xf32>
      %14 = vector.broadcast %13 : vector<1x128xf32> to vector<8x128xf32>
      %15 = arith.addf %12, %14 : vector<8x128xf32>
      %c0_14 = arith.constant 0 : index
      %c0_15 = arith.constant 0 : index
      %16 = vector.load %arg6[%c0_14, %c0_15] : memref<8x128xf32, #tpu.memory_space<vmem>>, vector<8x128xf32>
      tpu.vector_store %arg6[%c0_14, %c0_15], %15 {strides = array<i32>} : memref<8x128xf32, #tpu.memory_space<vmem>>, vector<8x128xf32>,
    } else {
    }
    return
  }
  func.func @transform_0(%arg0: i32, %arg1: i32, %arg2: i32) -> (i32, i32) {
    %c0_i32 = arith.constant 0 : i32
    return %arg0, %arg2 : i32, i32
  }
  func.func @transform_1(%arg0: i32, %arg1: i32, %arg2: i32) -> (i32, i32) {
    %c0_i32 = arith.constant 0 : i32
    return %arg2, %arg1 : i32, i32
  }
  func.func @transform_2(%arg0: i32, %arg1: i32, %arg2: i32) -> (i32, i32) {
    %c0_i32 = arith.constant 0 : i32
    %c0_i32_0 = arith.constant 0 : i32
    return %c0_i32, %arg1 : i32, i32
  }
  func.func @transform_3(%arg0: i32, %arg1: i32, %arg2: i32) -> (i32, i32) {
    %c0_i32 = arith.constant 0 : i32
    return %arg0, %arg1 : i32, i32
  }
}

module attributes {stable_mosaic.version = 11 : i64} {
  func.func @_matmul_bias_act_kernel(%arg0: i32, %arg1: i32, %arg2: i32, %arg3: memref<8x128xbf16, #tpu.memory_space<vmem>>, %arg4: memref<128x256xbf16, #tpu.memory_space<vmem>>, %arg5: memref<1x256xf32, #tpu.memory_space<vmem>>, %arg6: memref<8x256xbf16, #tpu.memory_space<vmem>>, %arg7: memref<8x256xf32, #tpu.memory_space<vmem>>) attributes {dimension_semantics = [#tpu.dimension_semantics<parallel>, #tpu.dimension_semantics<parallel>, #tpu.dimension_semantics<arbitrary>], iteration_bounds = array<i64: 1, 2, 1>, scalar_prefetch = 0 : i64, scratch_operands = 1 : i64, tpu.core_type = #tpu.core_type<tc>, window_params = [{transform_indices = @transform_0, window_bounds = array<i64: 8, 128>}, {transform_indices = @transform_1, window_bounds = array<i64: 128, 256>}, {transform_indices = @transform_2, window_bounds = array<i64: 1, 256>}, {transform_indices = @transform_3, window_bounds = array<i64: 8, 256>}]} {
    %c0_i32 = arith.constant 0 : i32
    %0 = arith.cmpi eq, %arg2, %c0_i32 : i32
    %1 = arith.extui %0 : i1 to i32
    %c0_i32_0 = arith.constant 0 : i32
    %2 = arith.cmpi ne, %1, %c0_i32_0 : i32
    scf.if %2 {
      %cst_10 = arith.constant 0.000000e+00 : f32
      %12 = vector.broadcast %cst_10 : f32 to vector<8x256xf32>
      %c0_11 = arith.constant 0 : index
      %c0_12 = arith.constant 0 : index
      %13 = vector.load %arg7[%c0_11, %c0_12] : memref<8x256xf32, #tpu.memory_space<vmem>>, vector<8x256xf32>
      tpu.vector_store %arg7[%c0_11, %c0_12], %12 {strides = array<i32>} : memref<8x256xf32, #tpu.memory_space<vmem>>, vector<8x256xf32>,
    } else {
    }
    %c0 = arith.constant 0 : index
    %c0_1 = arith.constant 0 : index
    %3 = vector.load %arg7[%c0, %c0_1] : memref<8x256xf32, #tpu.memory_space<vmem>>, vector<8x256xf32>
    %c0_2 = arith.constant 0 : index
    %c0_3 = arith.constant 0 : index
    %4 = vector.load %arg3[%c0_2, %c0_3] : memref<8x128xbf16, #tpu.memory_space<vmem>>, vector<8x128xbf16>
    %c0_4 = arith.constant 0 : index
    %c0_5 = arith.constant 0 : index
    %5 = vector.load %arg4[%c0_4, %c0_5] : memref<128x256xbf16, #tpu.memory_space<vmem>>, vector<128x256xbf16>
    %cst = arith.constant dense<0.000000e+00> : vector<8x256xf32>
    %6 = tpu.matmul %4, %5, %cst {dimension_numbers = #tpu.dot_dimension_numbers<[1], [0], [0], [1], [0, 0, 1, 1], [], []>} : vector<8x128xbf16>, vector<128x256xbf16>, vector<8x256xf32> -> vector<8x256xf32>
    %7 = arith.addf %3, %6 : vector<8x256xf32>
    %c0_6 = arith.constant 0 : index
    %c0_7 = arith.constant 0 : index
    %8 = vector.load %arg7[%c0_6, %c0_7] : memref<8x256xf32, #tpu.memory_space<vmem>>, vector<8x256xf32>
    tpu.vector_store %arg7[%c0_6, %c0_7], %7 {strides = array<i32>} : memref<8x256xf32, #tpu.memory_space<vmem>>, vector<8x256xf32>,
    %c0_i32_8 = arith.constant 0 : i32
    %9 = arith.cmpi eq, %arg2, %c0_i32_8 : i32
    %10 = arith.extui %9 : i1 to i32
    %c0_i32_9 = arith.constant 0 : i32
    %11 = arith.cmpi ne, %10, %c0_i32_9 : i32
    scf.if %11 {
      %c0_10 = arith.constant 0 : index
      %c0_11 = arith.constant 0 : index
      %12 = vector.load %arg7[%c0_10, %c0_11] : memref<8x256xf32, #tpu.memory_space<vmem>>, vector<8x256xf32>
      %c0_12 = arith.constant 0 : index
      %c0_13 = arith.constant 0 : index
      %13 = vector.load %arg5[%c0_12, %c0_13] : memref<1x256xf32, #tpu.memory_space<vmem>>, vector<1x256xf32>
      %14 = vector.broadcast %13 : vector<1x256xf32> to vector<8x256xf32>
      %15 = arith.addf %12, %14 : vector<8x256xf32>
      %cst_14 = arith.constant 0.000000e+00 : f32
      %16 = vector.broadcast %cst_14 : f32 to vector<8x256xf32>
      %17 = arith.maximumf %15, %16 : vector<8x256xf32>
      %18 = arith.truncf %17 : vector<8x256xf32> to vector<8x256xbf16>
      %c0_15 = arith.constant 0 : index
      %c0_16 = arith.constant 0 : index
      %19 = vector.load %arg6[%c0_15, %c0_16] : memref<8x256xbf16, #tpu.memory_space<vmem>>, vector<8x256xbf16>
      tpu.vector_store %arg6[%c0_15, %c0_16], %18 {strides = array<i32>} : memref<8x256xbf16, #tpu.memory_space<vmem>>, vector<8x256xbf16>,
    } else {
    }
    return
  }
  func.func @transform_0(%arg0: i32, %arg1: i32, %arg2: i32) -> (i32, i32) {
    %c0_i32 = arith.constant 0 : i32
    return %arg0, %arg2 : i32, i32
  }
  func.func @transform_1(%arg0: i32, %arg1: i32, %arg2: i32) -> (i32, i32) {
    %c0_i32 = arith.constant 0 : i32
    return %arg2, %arg1 : i32, i32
  }
  func.func @transform_2(%arg0: i32, %arg1: i32, %arg2: i32) -> (i32, i32) {
    %c0_i32 = arith.constant 0 : i32
    %c0_i32_0 = arith.constant 0 : i32
    return %c0_i32, %arg1 : i32, i32
  }
  func.func @transform_3(%arg0: i32, %arg1: i32, %arg2: i32) -> (i32, i32) {
    %c0_i32 = arith.constant 0 : i32
    return %arg0, %arg1 : i32, i32
  }
}

</mosaic_0001>

<llo_original>
// kernel: forward.5
$region0: #{forward.5}
  #allocation0 [shape = 'u32[]', space=smem, size = 0x4, offset = 0x4, fixed_abs, tag = 'smem constant byte address 0x4 - core index']
  #allocation1 [shape = 'u32[144,128]{1,0:T(1,128)}', space=vmem, size = 0x12000, scoped, tag = 'internal scratch']
  #allocation2 [shape = 'f32[128,32]{1,0:T(8,128)}', space=vmem, size = 0x10000, scoped, tag = 'scratch operand']
  %s0 = inlined_call_operand.vmem [shape: bf16[128,256], index: 0, kind: input, shape index: {}]
  %s1 = inlined_call_operand.vmem [shape: bf16[256,32], index: 1, kind: input, shape index: {}]
  %s2 = inlined_call_operand.vmem [shape: f32[1,32], index: 2, kind: input, shape index: {}]
  %s3 = inlined_call_operand.vmem [shape: bf16[128,32], index: 3, kind: output, shape index: {}]
  %s4 = sld [smem:[#allocation0]]
  $region30: #{forward.5} parent=0
    _
  %s6 = ssub.s32 1, %s4
  %s7 = scalar_select 0, %s6, %s4
  // Predicated region
  $region2: #{forward.5} parent=0 // pred_check
    _
  $region3: #{forward.5} parent=0 // pred_check_branch
    %9 = sbr.rel (0) target = $region5
  $region4: #{forward.5} parent=0 // pred_region
    _
  $region5: #{forward.5} parent=0 // pred_fallthru
    _
  // Predicated region
  $region6: #{forward.5} parent=0 // pred_check
    _
  $region7: #{forward.5} parent=0 // pred_check_branch
    %11 = sbr.rel (0) target = $region9
  $region8: #{forward.5} parent=0 // pred_region
    _
  $region9: #{forward.5} parent=0 // pred_fallthru
    _
  // Predicated region
  $region10: #{forward.5} parent=0 // pred_check
    _
  $region11: #{forward.5} parent=0 // pred_check_branch
    %13 = sbr.rel (0) target = $region13
  $region12: #{forward.5} parent=0 // pred_region
    _
  $region13: #{forward.5} parent=0 // pred_fallthru
    _
  %p15 = scmp.eq.s32.totalorder 0, 0
  // Predicated region
  $region14: #{forward.5} parent=0 // pred_check
    %p16 = pneg %p15
  $region15: #{forward.5} parent=0 // pred_check_branch
    %18 = sbr.rel (%p16) target = $region17
  $region16: #{forward.5} parent=0 // pred_region
    %vm19 = vcmask 261120
    %20 = vst.msk [vmem:[#allocation2] sm:$0xff] %vm19, 0.0
    %21 = vst.msk [vmem:[#allocation2 + $0x8] sm:$0xff] %vm19, 0.0
    %22 = vst.msk [vmem:[#allocation2 + $0x10] sm:$0xff] %vm19, 0.0
    %23 = vst.msk [vmem:[#allocation2 + $0x18] sm:$0xff] %vm19, 0.0
    %24 = vst.msk [vmem:[#allocation2 + $0x20] sm:$0xff] %vm19, 0.0
    %25 = vst.msk [vmem:[#allocation2 + $0x28] sm:$0xff] %vm19, 0.0
    %26 = vst.msk [vmem:[#allocation2 + $0x30] sm:$0xff] %vm19, 0.0
    %27 = vst.msk [vmem:[#allocation2 + $0x38] sm:$0xff] %vm19, 0.0
    %28 = vst.msk [vmem:[#allocation2 + $0x40] sm:$0xff] %vm19, 0.0
    %29 = vst.msk [vmem:[#allocation2 + $0x48] sm:$0xff] %vm19, 0.0
    %30 = vst.msk [vmem:[#allocation2 + $0x50] sm:$0xff] %vm19, 0.0
    %31 = vst.msk [vmem:[#allocation2 + $0x58] sm:$0xff] %vm19, 0.0
    %32 = vst.msk [vmem:[#allocation2 + $0x60] sm:$0xff] %vm19, 0.0
    %33 = vst.msk [vmem:[#allocation2 + $0x68] sm:$0xff] %vm19, 0.0
    %34 = vst.msk [vmem:[#allocation2 + $0x70] sm:$0xff] %vm19, 0.0
    %35 = vst.msk [vmem:[#allocation2 + $0x78] sm:$0xff] %vm19, 0.0
  $region17: #{forward.5} parent=0 // pred_fallthru
    _
  %v36 = vld [vmem:[#allocation2] sm:$0xff]
  %v37 = vld [vmem:[#allocation2 + $0x8] sm:$0xff]
  %v38 = vld [vmem:[#allocation2 + $0x10] sm:$0xff]
  %v39 = vld [vmem:[#allocation2 + $0x18] sm:$0xff]
  %v40 = vld [vmem:[#allocation2 + $0x20] sm:$0xff]
  %v41 = vld [vmem:[#allocation2 + $0x28] sm:$0xff]
  %v42 = vld [vmem:[#allocation2 + $0x30] sm:$0xff]
  %v43 = vld [vmem:[#allocation2 + $0x38] sm:$0xff]
  %v44 = vld [vmem:[#allocation2 + $0x40] sm:$0xff]
  %v45 = vld [vmem:[#allocation2 + $0x48] sm:$0xff]
  %v46 = vld [vmem:[#allocation2 + $0x50] sm:$0xff]
  %v47 = vld [vmem:[#allocation2 + $0x58] sm:$0xff]
  %v48 = vld [vmem:[#allocation2 + $0x60] sm:$0xff]
  %v49 = vld [vmem:[#allocation2 + $0x68] sm:$0xff]
  %v50 = vld [vmem:[#allocation2 + $0x70] sm:$0xff]
  %v51 = vld [vmem:[#allocation2 + $0x78] sm:$0xff]
  %v52 = vld [vmem:[%s0] sm:$0xff]
  %v53 = vld [vmem:[%s0 + $0x8] sm:$0xff]
  %v54 = vld [vmem:[%s0 + $0x10] sm:$0xff]
  %v55 = vld [vmem:[%s0 + $0x18] sm:$0xff]
  %v56 = vld [vmem:[%s0 + $0x20] sm:$0xff]
  %v57 = vld [vmem:[%s0 + $0x28] sm:$0xff]
  %v58 = vld [vmem:[%s0 + $0x30] sm:$0xff]
  %v59 = vld [vmem:[%s0 + $0x38] sm:$0xff]
  %v60 = vld [vmem:[%s0 + $0x40] sm:$0xff]
  %v61 = vld [vmem:[%s0 + $0x48] sm:$0xff]
  %v62 = vld [vmem:[%s0 + $0x50] sm:$0xff]
  %v63 = vld [vmem:[%s0 + $0x58] sm:$0xff]
  %v64 = vld [vmem:[%s0 + $0x60] sm:$0xff]
  %v65 = vld [vmem:[%s0 + $0x68] sm:$0xff]
  %v66 = vld [vmem:[%s0 + $0x70] sm:$0xff]
  %v67 = vld [vmem:[%s0 + $0x78] sm:$0xff]
  %v68 = vld [vmem:[%s1] sm:$0xf]
  %v69 = vld [vmem:[%s1 + $0x4] sm:$0xf]
  %v70 = vld [vmem:[%s1 + $0x8] sm:$0xf]
  %v71 = vld [vmem:[%s1 + $0xc] sm:$0xf]
  %v72 = vld [vmem:[%s1 + $0x10] sm:$0xf]
  %v73 = vld [vmem:[%s1 + $0x14] sm:$0xf]
  %v74 = vld [vmem:[%s1 + $0x18] sm:$0xf]
  %v75 = vld [vmem:[%s1 + $0x1c] sm:$0xf]
  %v76 = vld [vmem:[%s1 + $0x20] sm:$0xf]
  %v77 = vld [vmem:[%s1 + $0x24] sm:$0xf]
  %v78 = vld [vmem:[%s1 + $0x28] sm:$0xf]
  %v79 = vld [vmem:[%s1 + $0x2c] sm:$0xf]
  %v80 = vld [vmem:[%s1 + $0x30] sm:$0xf]
  %v81 = vld [vmem:[%s1 + $0x34] sm:$0xf]
  %v82 = vld [vmem:[%s1 + $0x38] sm:$0xf]
  %v83 = vld [vmem:[%s1 + $0x3c] sm:$0xf]
  %v84 = vld [vmem:[%s1 + $0x40] sm:$0xf]
  %v85 = vld [vmem:[%s1 + $0x44] sm:$0xf]
  %v86 = vld [vmem:[%s1 + $0x48] sm:$0xf]
  %v87 = vld [vmem:[%s1 + $0x4c] sm:$0xf]
  %v88 = vld [vmem:[%s1 + $0x50] sm:$0xf]
  %v89 = vld [vmem:[%s1 + $0x54] sm:$0xf]
  %v90 = vld [vmem:[%s1 + $0x58] sm:$0xf]
  %v91 = vld [vmem:[%s1 + $0x5c] sm:$0xf]
  %v92 = vld [vmem:[%s1 + $0x60] sm:$0xf]
  %v93 = vld [vmem:[%s1 + $0x64] sm:$0xf]
  %v94 = vld [vmem:[%s1 + $0x68] sm:$0xf]
  %v95 = vld [vmem:[%s1 + $0x6c] sm:$0xf]
  %v96 = vld [vmem:[%s1 + $0x70] sm:$0xf]
  %v97 = vld [vmem:[%s1 + $0x74] sm:$0xf]
  %v98 = vld [vmem:[%s1 + $0x78] sm:$0xf]
  %v99 = vld [vmem:[%s1 + $0x7c] sm:$0xf]
  %v116 = vunpack.c.l.b16 %v52
  %v117 = vunpack.c.h.b16 %v52
  %v118 = vunpack.c.l.b16 %v53
  %v119 = vunpack.c.h.b16 %v53
  %v120 = vunpack.c.l.b16 %v54
  %v121 = vunpack.c.h.b16 %v54
  %v122 = vunpack.c.l.b16 %v55
  %v123 = vunpack.c.h.b16 %v55
  %v124 = vunpack.c.l.b16 %v56
  %v125 = vunpack.c.h.b16 %v56
  %v126 = vunpack.c.l.b16 %v57
  %v127 = vunpack.c.h.b16 %v57
  %v128 = vunpack.c.l.b16 %v58
  %v129 = vunpack.c.h.b16 %v58
  %v130 = vunpack.c.l.b16 %v59
  %v131 = vunpack.c.h.b16 %v59
  %v132 = vunpack.c.l.b16 %v60
  %v133 = vunpack.c.h.b16 %v60
  %v134 = vunpack.c.l.b16 %v61
  %v135 = vunpack.c.h.b16 %v61
  %v136 = vunpack.c.l.b16 %v62
  %v137 = vunpack.c.h.b16 %v62
  %v138 = vunpack.c.l.b16 %v63
  %v139 = vunpack.c.h.b16 %v63
  %v140 = vunpack.c.l.b16 %v64
  %v141 = vunpack.c.h.b16 %v64
  %v142 = vunpack.c.l.b16 %v65
  %v143 = vunpack.c.h.b16 %v65
  %v144 = vunpack.c.l.b16 %v66
  %v145 = vunpack.c.h.b16 %v66
  %v146 = vunpack.c.l.b16 %v67
  %v147 = vunpack.c.h.b16 %v67
  %v148 = vpack.c.b16 %v118, %v116
  %v149 = vpack.c.b16 %v119, %v117
  %v150 = vpack.c.b16 %v122, %v120
  %v151 = vpack.c.b16 %v123, %v121
  %v152 = vpack.c.b16 %v126, %v124
  %v153 = vpack.c.b16 %v127, %v125
  %v154 = vpack.c.b16 %v130, %v128
  %v155 = vpack.c.b16 %v131, %v129
  %v156 = vpack.c.b16 %v134, %v132
  %v157 = vpack.c.b16 %v135, %v133
  %v158 = vpack.c.b16 %v138, %v136
  %v159 = vpack.c.b16 %v139, %v137
  %v160 = vpack.c.b16 %v142, %v140
  %v161 = vpack.c.b16 %v143, %v141
  %v162 = vpack.c.b16 %v146, %v144
  %v163 = vpack.c.b16 %v147, %v145
  %v212 = vunpack.c.l.b16 %v68
  %v213 = vunpack.c.l.b16 %v69
  %v214 = vunpack.c.l.b16 %v70
  %v215 = vunpack.c.l.b16 %v71
  %v216 = vunpack.c.l.b16 %v72
  %v217 = vunpack.c.l.b16 %v73
  %v218 = vunpack.c.l.b16 %v74
  %v219 = vunpack.c.l.b16 %v75
  %v220 = vunpack.c.l.b16 %v76
  %v221 = vunpack.c.l.b16 %v77
  %v222 = vunpack.c.l.b16 %v78
  %v223 = vunpack.c.l.b16 %v79
  %v224 = vunpack.c.l.b16 %v80
  %v225 = vunpack.c.l.b16 %v81
  %v226 = vunpack.c.l.b16 %v82
  %v227 = vunpack.c.l.b16 %v83
  %v228 = vunpack.c.l.b16 %v84
  %v229 = vunpack.c.l.b16 %v85
  %v230 = vunpack.c.l.b16 %v86
  %v231 = vunpack.c.l.b16 %v87
  %v232 = vunpack.c.l.b16 %v88
  %v233 = vunpack.c.l.b16 %v89
  %v234 = vunpack.c.l.b16 %v90
  %v235 = vunpack.c.l.b16 %v91
  %v236 = vunpack.c.l.b16 %v92
  %v237 = vunpack.c.l.b16 %v93
  %v238 = vunpack.c.l.b16 %v94
  %v239 = vunpack.c.l.b16 %v95
  %v240 = vunpack.c.l.b16 %v96
  %v241 = vunpack.c.l.b16 %v97
  %v242 = vunpack.c.l.b16 %v98
  %v243 = vunpack.c.l.b16 %v99
  %v244 = vpack.c.b16 %v213, %v212
  %v245 = vpack.c.b16 %v215, %v214
  %v246 = vpack.c.b16 %v217, %v216
  %v247 = vpack.c.b16 %v219, %v218
  %v248 = vpack.c.b16 %v221, %v220
  %v249 = vpack.c.b16 %v223, %v222
  %v250 = vpack.c.b16 %v225, %v224
  %v251 = vpack.c.b16 %v227, %v226
  %v252 = vpack.c.b16 %v229, %v228
  %v253 = vpack.c.b16 %v231, %v230
  %v254 = vpack.c.b16 %v233, %v232
  %v255 = vpack.c.b16 %v235, %v234
  %v256 = vpack.c.b16 %v237, %v236
  %v257 = vpack.c.b16 %v239, %v238
  %v258 = vpack.c.b16 %v241, %v240
  %v259 = vpack.c.b16 %v243, %v242
  %276 = vmatprep.subr.bf16.mxu0 0
  %277 = vmatpush1.bf16.msra.mxu0 %v251
  %278 = vmatprep.subr.bf16.mxu0 0
  %279 = vmatpush1.bf16.msra.mxu0 %v250
  %280 = vmatprep.subr.bf16.mxu0 0
  %281 = vmatpush1.bf16.msra.mxu0 %v249
  %282 = vmatprep.subr.bf16.mxu0 0
  %283 = vmatpush1.bf16.msra.mxu0 %v248
  %284 = vmatprep.subr.bf16.mxu0 0
  %285 = vmatpush1.bf16.msra.mxu0 %v247
  %286 = vmatprep.subr.bf16.mxu0 0
  %287 = vmatpush1.bf16.msra.mxu0 %v246
  %288 = vmatprep.subr.bf16.mxu0 0
  %289 = vmatpush1.bf16.msra.mxu0 %v245
  %290 = vmatprep.subr.bf16.mxu0 0
  %291 = vmatpush1.bf16.msra.mxu0 %v244
  %292 = vmatprep.subr.bf16.mxu0 0
  %293 = vmatpush2.bf16.msra.mxu0 %v259
  %294 = vmatprep.subr.bf16.mxu0 0
  %295 = vmatpush2.bf16.msra.mxu0 %v258
  %296 = vmatprep.subr.bf16.mxu0 0
  %297 = vmatpush2.bf16.msra.mxu0 %v257
  %298 = vmatprep.subr.bf16.mxu0 0
  %299 = vmatpush2.bf16.msra.mxu0 %v256
  %300 = vmatprep.subr.bf16.mxu0 0
  %301 = vmatpush2.bf16.msra.mxu0 %v255
  %302 = vmatprep.subr.bf16.mxu0 0
  %303 = vmatpush2.bf16.msra.mxu0 %v254
  %304 = vmatprep.subr.bf16.mxu0 0
  %305 = vmatpush2.bf16.msra.mxu0 %v253
  %306 = vmatprep.subr.bf16.mxu0 0
  %307 = vmatpush2.bf16.msra.mxu0 %v252
  %308 = vmatprep.mubr.bf16.mxu0 %v149
  %309 = vmatmul.mubr.bf16.gmra.mxu0 %v148
  %v310 = vpop.f32.mrf.mxu0
  %v311 = vadd.f32 0.0, %v310
  %v312 = vpop.f32.mrf.mxu0
  %v313 = vpop.f32.mrf.mxu0
  %v314 = vadd.f32 0.0, %v313
  %v315 = vpop.f32.mrf.mxu0
  %316 = vmatprep.mubr.bf16.mxu0 %v151
  %317 = vmatmul.mubr.bf16.gmra.mxu0 %v150
  %v318 = vpop.f32.mrf.mxu0
  %v319 = vadd.f32 0.0, %v318
  %v320 = vpop.f32.mrf.mxu0
  %v321 = vpop.f32.mrf.mxu0
  %v322 = vadd.f32 0.0, %v321
  %v323 = vpop.f32.mrf.mxu0
  %324 = vmatprep.mubr.bf16.mxu0 %v153
  %325 = vmatmul.mubr.bf16.gmra.mxu0 %v152
  %v326 = vpop.f32.mrf.mxu0
  %v327 = vadd.f32 0.0, %v326
  %v328 = vpop.f32.mrf.mxu0
  %v329 = vpop.f32.mrf.mxu0
  %v330 = vadd.f32 0.0, %v329
  %v331 = vpop.f32.mrf.mxu0
  %332 = vmatprep.mubr.bf16.mxu0 %v155
  %333 = vmatmul.mubr.bf16.gmra.mxu0 %v154
  %v334 = vpop.f32.mrf.mxu0
  %v335 = vadd.f32 0.0, %v334
  %v336 = vpop.f32.mrf.mxu0
  %v337 = vpop.f32.mrf.mxu0
  %v338 = vadd.f32 0.0, %v337
  %v339 = vpop.f32.mrf.mxu0
  %340 = vmatprep.mubr.bf16.mxu0 %v157
  %341 = vmatmul.mubr.bf16.gmra.mxu0 %v156
  %v342 = vpop.f32.mrf.mxu0
  %v343 = vadd.f32 0.0, %v342
  %v344 = vpop.f32.mrf.mxu0
  %v345 = vpop.f32.mrf.mxu0
  %v346 = vadd.f32 0.0, %v345
  %v347 = vpop.f32.mrf.mxu0
  %348 = vmatprep.mubr.bf16.mxu0 %v159
  %349 = vmatmul.mubr.bf16.gmra.mxu0 %v158
  %v350 = vpop.f32.mrf.mxu0
  %v351 = vadd.f32 0.0, %v350
  %v352 = vpop.f32.mrf.mxu0
  %v353 = vpop.f32.mrf.mxu0
  %v354 = vadd.f32 0.0, %v353
  %v355 = vpop.f32.mrf.mxu0
  %356 = vmatprep.mubr.bf16.mxu0 %v161
  %357 = vmatmul.mubr.bf16.gmra.mxu0 %v160
  %v358 = vpop.f32.mrf.mxu0
  %v359 = vadd.f32 0.0, %v358
  %v360 = vpop.f32.mrf.mxu0
  %v361 = vpop.f32.mrf.mxu0
  %v362 = vadd.f32 0.0, %v361
  %v363 = vpop.f32.mrf.mxu0
  %364 = vmatprep.mubr.bf16.mxu0 %v163
  %365 = vmatmul.mubr.bf16.gmra.mxu0 %v162
  %v366 = vpop.f32.mrf.mxu0
  %v367 = vadd.f32 0.0, %v366
  %v368 = vpop.f32.mrf.mxu0
  %v369 = vpop.f32.mrf.mxu0
  %v370 = vadd.f32 0.0, %v369
  %v371 = vpop.f32.mrf.mxu0
  %372 = vdwg.mxu0
  %v373 = vadd.f32 %v36, %v311
  %v374 = vadd.f32 %v37, %v314
  %v375 = vadd.f32 %v38, %v319
  %v376 = vadd.f32 %v39, %v322
  %v377 = vadd.f32 %v40, %v327
  %v378 = vadd.f32 %v41, %v330
  %v379 = vadd.f32 %v42, %v335
  %v380 = vadd.f32 %v43, %v338
  %v381 = vadd.f32 %v44, %v343
  %v382 = vadd.f32 %v45, %v346
  %v383 = vadd.f32 %v46, %v351
  %v384 = vadd.f32 %v47, %v354
  %v385 = vadd.f32 %v48, %v359
  %v386 = vadd.f32 %v49, %v362
  %v387 = vadd.f32 %v50, %v367
  %v388 = vadd.f32 %v51, %v370
  %vm389 = vcmask 261120
  %390 = vst.msk [vmem:[#allocation2] sm:$0xff] %vm389, %v373
  %391 = vst.msk [vmem:[#allocation2 + $0x8] sm:$0xff] %vm389, %v374
  %392 = vst.msk [vmem:[#allocation2 + $0x10] sm:$0xff] %vm389, %v375
  %393 = vst.msk [vmem:[#allocation2 + $0x18] sm:$0xff] %vm389, %v376
  %394 = vst.msk [vmem:[#allocation2 + $0x20] sm:$0xff] %vm389, %v377
  %395 = vst.msk [vmem:[#allocation2 + $0x28] sm:$0xff] %vm389, %v378
  %396 = vst.msk [vmem:[#allocation2 + $0x30] sm:$0xff] %vm389, %v379
  %397 = vst.msk [vmem:[#allocation2 + $0x38] sm:$0xff] %vm389, %v380
  %398 = vst.msk [vmem:[#allocation2 + $0x40] sm:$0xff] %vm389, %v381
  %399 = vst.msk [vmem:[#allocation2 + $0x48] sm:$0xff] %vm389, %v382
  %400 = vst.msk [vmem:[#allocation2 + $0x50] sm:$0xff] %vm389, %v383
  %401 = vst.msk [vmem:[#allocation2 + $0x58] sm:$0xff] %vm389, %v384
  %402 = vst.msk [vmem:[#allocation2 + $0x60] sm:$0xff] %vm389, %v385
  %403 = vst.msk [vmem:[#allocation2 + $0x68] sm:$0xff] %vm389, %v386
  %404 = vst.msk [vmem:[#allocation2 + $0x70] sm:$0xff] %vm389, %v387
  %405 = vst.msk [vmem:[#allocation2 + $0x78] sm:$0xff] %vm389, %v388
  // Predicated region
  $region18: #{forward.5} parent=0 // pred_check
    %p406 = pneg %p15
  $region19: #{forward.5} parent=0 // pred_check_branch
    %408 = sbr.rel (%p406) target = $region21
  $region20: #{forward.5} parent=0 // pred_region
    %v409 = vld [vmem:[#allocation2] sm:$0xff]
    %v410 = vld [vmem:[#allocation2 + $0x8] sm:$0xff]
    %v411 = vld [vmem:[#allocation2 + $0x10] sm:$0xff]
    %v412 = vld [vmem:[#allocation2 + $0x18] sm:$0xff]
    %v413 = vld [vmem:[#allocation2 + $0x20] sm:$0xff]
    %v414 = vld [vmem:[#allocation2 + $0x28] sm:$0xff]
    %v415 = vld [vmem:[#allocation2 + $0x30] sm:$0xff]
    %v416 = vld [vmem:[#allocation2 + $0x38] sm:$0xff]
    %v417 = vld [vmem:[#allocation2 + $0x40] sm:$0xff]
    %v418 = vld [vmem:[#allocation2 + $0x48] sm:$0xff]
    %v419 = vld [vmem:[#allocation2 + $0x50] sm:$0xff]
    %v420 = vld [vmem:[#allocation2 + $0x58] sm:$0xff]
    %v421 = vld [vmem:[#allocation2 + $0x60] sm:$0xff]
    %v422 = vld [vmem:[#allocation2 + $0x68] sm:$0xff]
    %v423 = vld [vmem:[#allocation2 + $0x70] sm:$0xff]
    %v424 = vld [vmem:[#allocation2 + $0x78] sm:$0xff]
    %v425 = vld [vmem:[%s2] sm:$0x1]
    %v427 = vlaneseq
    %v428 = vshrl.u32 %v427, 7
    %v429 = vsub.s32 0, %v428
    %v430 = vrot.slane %v425, %v429
    %v432 = vadd.f32 %v409, %v430
    %v433 = vadd.f32 %v410, %v430
    %v434 = vadd.f32 %v411, %v430
    %v435 = vadd.f32 %v412, %v430
    %v436 = vadd.f32 %v413, %v430
    %v437 = vadd.f32 %v414, %v430
    %v438 = vadd.f32 %v415, %v430
    %v439 = vadd.f32 %v416, %v430
    %v440 = vadd.f32 %v417, %v430
    %v441 = vadd.f32 %v418, %v430
    %v442 = vadd.f32 %v419, %v430
    %v443 = vadd.f32 %v420, %v430
    %v444 = vadd.f32 %v421, %v430
    %v445 = vadd.f32 %v422, %v430
    %v446 = vadd.f32 %v423, %v430
    %v447 = vadd.f32 %v424, %v430
    %v448 = vmax.f32 %v432, 0.0
    %v449 = vmax.f32 %v433, 0.0
    %v450 = vmax.f32 %v434, 0.0
    %v451 = vmax.f32 %v435, 0.0
    %v452 = vmax.f32 %v436, 0.0
    %v453 = vmax.f32 %v437, 0.0
    %v454 = vmax.f32 %v438, 0.0
    %v455 = vmax.f32 %v439, 0.0
    %v456 = vmax.f32 %v440, 0.0
    %v457 = vmax.f32 %v441, 0.0
    %v458 = vmax.f32 %v442, 0.0
    %v459 = vmax.f32 %v443, 0.0
    %v460 = vmax.f32 %v444, 0.0
    %v461 = vmax.f32 %v445, 0.0
    %v462 = vmax.f32 %v446, 0.0
    %v463 = vmax.f32 %v447, 0.0
    %v464 = vpack.c.bf16 %v449, %v448
    %v465 = vpack.c.bf16 %v451, %v450
    %v466 = vpack.c.bf16 %v453, %v452
    %v467 = vpack.c.bf16 %v455, %v454
    %v468 = vpack.c.bf16 %v457, %v456
    %v469 = vpack.c.bf16 %v459, %v458
    %v470 = vpack.c.bf16 %v461, %v460
    %v471 = vpack.c.bf16 %v463, %v462
    %v480 = vunpack.c.l.b16 %v464
    %v481 = vunpack.c.h.b16 %v464
    %v482 = vunpack.c.l.b16 %v465
    %v483 = vunpack.c.h.b16 %v465
    %v484 = vunpack.c.l.b16 %v466
    %v485 = vunpack.c.h.b16 %v466
    %v486 = vunpack.c.l.b16 %v467
    %v487 = vunpack.c.h.b16 %v467
    %v488 = vunpack.c.l.b16 %v468
    %v489 = vunpack.c.h.b16 %v468
    %v490 = vunpack.c.l.b16 %v469
    %v491 = vunpack.c.h.b16 %v469
    %v492 = vunpack.c.l.b16 %v470
    %v493 = vunpack.c.h.b16 %v470
    %v494 = vunpack.c.l.b16 %v471
    %v495 = vunpack.c.h.b16 %v471
    %v496 = vpack.c.b16 %v480, %v480
    %v497 = vpack.c.b16 %v481, %v481
    %v498 = vpack.c.b16 %v482, %v482
    %v499 = vpack.c.b16 %v483, %v483
    %v500 = vpack.c.b16 %v484, %v484
    %v501 = vpack.c.b16 %v485, %v485
    %v502 = vpack.c.b16 %v486, %v486
    %v503 = vpack.c.b16 %v487, %v487
    %v504 = vpack.c.b16 %v488, %v488
    %v505 = vpack.c.b16 %v489, %v489
    %v506 = vpack.c.b16 %v490, %v490
    %v507 = vpack.c.b16 %v491, %v491
    %v508 = vpack.c.b16 %v492, %v492
    %v509 = vpack.c.b16 %v493, %v493
    %v510 = vpack.c.b16 %v494, %v494
    %v511 = vpack.c.b16 %v495, %v495
    %vm528 = vcmask 257024
    %529 = vst.msk [vmem:[%s3] sm:$0xf] %vm528, %v496
    %530 = vst.msk [vmem:[%s3 + $0x4] sm:$0xf] %vm528, %v497
    %531 = vst.msk [vmem:[%s3 + $0x8] sm:$0xf] %vm528, %v498
    %532 = vst.msk [vmem:[%s3 + $0xc] sm:$0xf] %vm528, %v499
    %533 = vst.msk [vmem:[%s3 + $0x10] sm:$0xf] %vm528, %v500
    %534 = vst.msk [vmem:[%s3 + $0x14] sm:$0xf] %vm528, %v501
    %535 = vst.msk [vmem:[%s3 + $0x18] sm:$0xf] %vm528, %v502
    %536 = vst.msk [vmem:[%s3 + $0x1c] sm:$0xf] %vm528, %v503
    %537 = vst.msk [vmem:[%s3 + $0x20] sm:$0xf] %vm528, %v504
    %538 = vst.msk [vmem:[%s3 + $0x24] sm:$0xf] %vm528, %v505
    %539 = vst.msk [vmem:[%s3 + $0x28] sm:$0xf] %vm528, %v506
    %540 = vst.msk [vmem:[%s3 + $0x2c] sm:$0xf] %vm528, %v507
    %541 = vst.msk [vmem:[%s3 + $0x30] sm:$0xf] %vm528, %v508
    %542 = vst.msk [vmem:[%s3 + $0x34] sm:$0xf] %vm528, %v509
    %543 = vst.msk [vmem:[%s3 + $0x38] sm:$0xf] %vm528, %v510
    %544 = vst.msk [vmem:[%s3 + $0x3c] sm:$0xf] %vm528, %v511
  $region21: #{forward.5} parent=0 // pred_fallthru
    _
  // Predicated region
  $region22: #{forward.5} parent=0 // pred_check
    _
  $region23: #{forward.5} parent=0 // pred_check_branch
    %546 = sbr.rel (0) target = $region25
  $region24: #{forward.5} parent=0 // pred_region
    _
  $region25: #{forward.5} parent=0 // pred_fallthru
    _
  // Predicated region
  $region26: #{forward.5} parent=0 // pred_check
    _
  $region27: #{forward.5} parent=0 // pred_check_branch
    %548 = sbr.rel (0) target = $region29
  $region28: #{forward.5} parent=0 // pred_region
    _
  $region29: #{forward.5} parent=0 // pred_fallthru
    _

// kernel: forward.6
$region0: #{forward.6}
  #allocation0 [shape = 'u32[]', space=smem, size = 0x4, offset = 0x4, fixed_abs, tag = 'smem constant byte address 0x4 - core index']
  #allocation1 [shape = 'u32[144,128]{1,0:T(1,128)}', space=vmem, size = 0x12000, scoped, tag = 'internal scratch']
  #allocation2 [shape = 'f32[8,64]{1,0:T(8,128)}', space=vmem, size = 0x1000, scoped, tag = 'scratch operand']
  %s0 = inlined_call_operand.vmem [shape: bf16[24,512], index: 0, kind: input, shape index: {}]
  %s1 = inlined_call_operand.vmem [shape: bf16[512,64], index: 1, kind: input, shape index: {}]
  %s2 = inlined_call_operand.vmem [shape: f32[1,64], index: 2, kind: input, shape index: {}]
  %s3 = inlined_call_operand.vmem [shape: bf16[24,64], index: 3, kind: output, shape index: {}]
  %s4 = sld [smem:[#allocation0]]
  $region53: #{forward.6} parent=0
    _
  %s6 = ssub.s32 1, %s4
  %s7 = scalar_select 0, %s6, %s4
  loop: start=0, step=1, limit=5
  $region2: #{forward.6} parent=0 // loop_pre_header
    _
  $region3: #{forward.6} parent=0 // loop_header
    %s9 = sphi 0, %s13
    %p10 = scmp.ge.s32.totalorder %s9, 5
    %s16 = sphi 0, %s35
    %s17 = sphi 0, %s31
    %s18 = sphi 0, %s27
    %s19 = sphi 0, %s16
    %s20 = sphi 0, %s17
    %s21 = sphi 0, %s18
    %s22 = sphi 0, %s19
    %s23 = sphi 0, %s20
    %s24 = sphi 0, %s21
    %s40 = sphi 0, %s42
    %s43 = sphi 0, %s40
    %s44 = sphi 0, %s43
    %s60 = sphi 0, %s44
    %s68 = sphi 0, %s70
    %s71 = sphi 0, %s68
    %s72 = sphi 0, %s71
    %s88 = sphi 0, %s72
    %s94 = sphi 0, %s96
    %s97 = sphi 0, %s94
    %s98 = sphi 0, %s97
    %s114 = sphi 0, %s98
    %s122 = sphi 0, %s124
    %s125 = sphi 0, %s122
    %s126 = sphi 0, %s125
    %s142 = sphi 0, %s126
  $region4: #{forward.6} parent=0 // loop_header_branch
    %12 = sbr.rel (%p10) target = $region8
  $region5: #{forward.6} parent=0 // loop_body
    %s14 = ssub.s32 %s9, 1
    %s15 = ssub.s32 %s9, 2
    %s25 = sadd.s32 1, %s18
    %p26 = scmp.ge.s32.totalorder %s25, 1
    %s27 = scalar_select %p26, 0, %s25
    %s28 = sadd.s32 1, %s17
    %s29 = scalar_select %p26, %s28, %s17
    %p30 = scmp.ge.s32.totalorder %s29, 1
    %s31 = scalar_select %p30, 0, %s29
    %s32 = sadd.s32 1, %s16
    %s33 = scalar_select %p30, %s32, %s16
    %p34 = scmp.ge.s32.totalorder %s33, 3
    %s35 = scalar_select %p34, 0, %s33
    %s36 = ssub.s32 %s16, %s35
    %s37 = ssub.s32 %s18, %s27
    %s38 = sor.u32 %s36, %s37
    %p39 = scmp.eq.s32.totalorder %s38, 0
    %s41 = sadd.s32 %s40, 1
    %s42 = scalar_select %p39, %s40, %s41
    %p45 = pneg %p39
    %p46 = scmp.eq.s32.totalorder %s9, 2
    %p47 = por %p45, %p46
    %p48 = scmp.ne.s32.totalorder %s40, %s43
    %p49 = scmp.eq.s32.totalorder %s9, 0
    %p50 = por %p48, %p49
    %p51 = scmp.ne.s32.totalorder %s40, %s43
    %p52 = scmp.eq.s32.totalorder %s14, 2
    %p53 = por %p51, %p52
    %p54 = scmp.ne.s32.totalorder %s43, %s44
    %p55 = scmp.eq.s32.totalorder %s14, 0
    %p56 = por %p54, %p55
    %p57 = scmp.ne.s32.totalorder %s43, %s44
    %p58 = scmp.eq.s32.totalorder %s15, 2
    %p59 = por %p57, %p58
    %p61 = scmp.ne.s32.totalorder %s44, %s60
    %p62 = scmp.eq.s32.totalorder %s15, 0
    %p63 = por %p61, %p62
    %s64 = ssub.s32 %s18, %s27
    %s65 = ssub.s32 %s17, %s31
    %s66 = sor.u32 %s64, %s65
    %p67 = scmp.eq.s32.totalorder %s66, 0
    %s69 = sadd.s32 %s68, 1
    %s70 = scalar_select %p67, %s68, %s69
    %p73 = pneg %p67
    %p74 = scmp.eq.s32.totalorder %s9, 2
    %p75 = por %p73, %p74
    %p76 = scmp.ne.s32.totalorder %s68, %s71
    %p77 = scmp.eq.s32.totalorder %s9, 0
    %p78 = por %p76, %p77
    %p79 = scmp.ne.s32.totalorder %s68, %s71
    %p80 = scmp.eq.s32.totalorder %s14, 2
    %p81 = por %p79, %p80
    %p82 = scmp.ne.s32.totalorder %s71, %s72
    %p83 = scmp.eq.s32.totalorder %s14, 0
    %p84 = por %p82, %p83
    %p85 = scmp.ne.s32.totalorder %s71, %s72
    %p86 = scmp.eq.s32.totalorder %s15, 2
    %p87 = por %p85, %p86
    %p89 = scmp.ne.s32.totalorder %s72, %s88
    %p90 = scmp.eq.s32.totalorder %s15, 0
    %p91 = por %p89, %p90
    %s92 = ssub.s32 %s17, %s31
    %p93 = scmp.eq.s32.totalorder %s92, 0
    %s95 = sadd.s32 %s94, 1
    %s96 = scalar_select %p93, %s94, %s95
    %p99 = pneg %p93
    %p100 = scmp.eq.s32.totalorder %s9, 2
    %p101 = por %p99, %p100
    %p102 = scmp.ne.s32.totalorder %s94, %s97
    %p103 = scmp.eq.s32.totalorder %s9, 0
    %p104 = por %p102, %p103
    %p105 = scmp.ne.s32.totalorder %s94, %s97
    %p106 = scmp.eq.s32.totalorder %s14, 2
    %p107 = por %p105, %p106
    %p108 = scmp.ne.s32.totalorder %s97, %s98
    %p109 = scmp.eq.s32.totalorder %s14, 0
    %p110 = por %p108, %p109
    %p111 = scmp.ne.s32.totalorder %s97, %s98
    %p112 = scmp.eq.s32.totalorder %s15, 2
    %p113 = por %p111, %p112
    %p115 = scmp.ne.s32.totalorder %s98, %s114
    %p116 = scmp.eq.s32.totalorder %s15, 0
    %p117 = por %p115, %p116
    %s118 = ssub.s32 %s16, %s35
    %s119 = ssub.s32 %s17, %s31
    %s120 = sor.u32 %s118, %s119
    %p121 = scmp.eq.s32.totalorder %s120, 0
    %s123 = sadd.s32 %s122, 1
    %s124 = scalar_select %p121, %s122, %s123
    %p127 = pneg %p121
    %p128 = scmp.eq.s32.totalorder %s9, 2
    %p129 = por %p127, %p128
    %p130 = scmp.ne.s32.totalorder %s122, %s125
    %p131 = scmp.eq.s32.totalorder %s9, 0
    %p132 = por %p130, %p131
    %p133 = scmp.ne.s32.totalorder %s122, %s125
    %p134 = scmp.eq.s32.totalorder %s14, 2
    %p135 = por %p133, %p134
    %p136 = scmp.ne.s32.totalorder %s125, %s126
    %p137 = scmp.eq.s32.totalorder %s14, 0
    %p138 = por %p136, %p137
    %p139 = scmp.ne.s32.totalorder %s125, %s126
    %p140 = scmp.eq.s32.totalorder %s15, 2
    %p141 = por %p139, %p140
    %p143 = scmp.ne.s32.totalorder %s126, %s142
    %p144 = scmp.eq.s32.totalorder %s15, 0
    %p145 = por %p143, %p144
    %p146 = scmp.le.s32.totalorder 1, %s9
    %p147 = scmp.lt.s32.totalorder %s9, 4
    %p148 = pnand %p146, %p147
    %p149 = pneg %p148
    // Predicated region
    $region9: #{forward.6} parent=5 // pred_check
      _
    $region10: #{forward.6} parent=5 // pred_check_branch
      %151 = sbr.rel (%p148) target = $region12
    $region11: #{forward.6} parent=5 // pred_region
      %s152 = ssub.s32 %s9, 1
      // Predicated region
      $region13: #{forward.6} parent=11 // pred_check
        %p153 = pneg %p84
      $region14: #{forward.6} parent=11 // pred_check_branch
        %155 = sbr.rel (%p153) target = $region16
      $region15: #{forward.6} parent=11 // pred_region
        %s156 = smul.u32 64, %s21
        %p157 = scmp.lt.s32.totalorder %s156, 63
        %s158 = scalar_select %p157, %s156, 63
        %p159 = scmp.lt.s32.totalorder %s20, 0
        %s160 = scalar_select %p159, %s20, 0
        %s161 = sadd.s32 %s160, %s158
        %s162 = smul.addr %s161, 4
        %s163 = scalar_lea.vmem %s1, %s162
        %s164 = smul.u32 64, %s21
      $region16: #{forward.6} parent=11 // pred_fallthru
        _
      // Predicated region
      $region17: #{forward.6} parent=11 // pred_check
        %p165 = pneg %p110
      $region18: #{forward.6} parent=11 // pred_check_branch
        %167 = sbr.rel (%p165) target = $region20
      $region19: #{forward.6} parent=11 // pred_region
        %p168 = scmp.lt.s32.totalorder %s20, 0
        %s169 = scalar_select %p168, %s20, 0
        %s170 = scalar_lea.vmem %s2, %s169
      $region20: #{forward.6} parent=11 // pred_fallthru
        _
    $region12: #{forward.6} parent=5 // pred_fallthru
      _
    %p171 = scmp.lt.s32.totalorder %s9, 3
    // Predicated region
    $region21: #{forward.6} parent=5 // pred_check
      %p172 = pneg %p171
    $region22: #{forward.6} parent=5 // pred_check_branch
      %174 = sbr.rel (%p172) target = $region24
    $region23: #{forward.6} parent=5 // pred_region
      // Predicated region
      $region25: #{forward.6} parent=23 // pred_check
        %p175 = pneg %p50
      $region26: #{forward.6} parent=23 // pred_check_branch
        %177 = sbr.rel (%p175) target = $region28
      $region27: #{forward.6} parent=23 // pred_region
        %s178 = smul.u32 4, %s18
        %p179 = scmp.lt.s32.totalorder %s16, 2
        %s180 = scalar_select %p179, %s16, 2
        %p181 = scmp.lt.s32.totalorder %s178, 3
        %s182 = scalar_select %p181, %s178, 3
        %s183 = smul.addr %s180, 4
        %s184 = sadd.s32 %s182, %s183
        %s185 = smul.addr %s184, 4
        %s186 = scalar_lea.vmem %s0, %s185
        %s187 = smul.u32 4, %s18
      $region28: #{forward.6} parent=23 // pred_fallthru
        _
    $region24: #{forward.6} parent=5 // pred_fallthru
      _
    %p188 = scmp.le.s32.totalorder 1, %s9
    %p189 = scmp.lt.s32.totalorder %s9, 4
    %p190 = pnand %p188, %p189
    %p191 = pneg %p190
    // Predicated region
    $region29: #{forward.6} parent=5 // pred_check
      _
    $region30: #{forward.6} parent=5 // pred_check_branch
      %193 = sbr.rel (%p190) target = $region32
    $region31: #{forward.6} parent=5 // pred_region
      %s194 = ssub.s32 %s9, 1
      %s195 = smul.u32 4, %s21
      %p196 = scmp.lt.s32.totalorder %s19, 2
      %s197 = scalar_select %p196, %s19, 2
      %p198 = scmp.lt.s32.totalorder %s195, 3
      %s199 = scalar_select %p198, %s195, 3
      %s200 = smul.addr %s197, 4
      %s201 = sadd.s32 %s199, %s200
      %s202 = smul.addr %s201, 4
      %s203 = scalar_lea.vmem %s0, %s202
      %p204 = pneg %p56
      %p205 = pneg %p53
      %s206 = smul.u32 64, %s21
      %p207 = scmp.lt.s32.totalorder %s206, 63
      %s208 = scalar_select %p207, %s206, 63
      %p209 = scmp.lt.s32.totalorder %s20, 0
      %s210 = scalar_select %p209, %s20, 0
      %s211 = sadd.s32 %s210, %s208
      %s212 = smul.addr %s211, 4
      %s213 = scalar_lea.vmem %s1, %s212
      %p214 = pneg %p84
      %p215 = pneg %p81
      %p216 = scmp.lt.s32.totalorder %s20, 0
      %s217 = scalar_select %p216, %s20, 0
      %s218 = scalar_lea.vmem %s2, %s217
      %p219 = pneg %p110
      %p220 = pneg %p107
      %p221 = pneg %p138
      %p222 = pneg %p135
      %p223 = scmp.lt.s32.totalorder %s19, 2
      %s224 = scalar_select %p223, %s19, 2
      %p225 = scmp.lt.s32.totalorder %s20, 0
      %s226 = scalar_select %p225, %s20, 0
      %s227 = sadd.s32 %s226, %s224
      %s228 = smul.addr %s227, 4
      %s229 = scalar_lea.vmem %s3, %s228
      %s230 = smul.u32 4, %s21
      %p231 = scmp.lt.s32.totalorder %s19, 2
      %s232 = scalar_select %p231, %s19, 2
      %p233 = scmp.lt.s32.totalorder %s230, 3
      %s234 = scalar_select %p233, %s230, 3
      %s235 = smul.addr %s232, 4
      %s236 = sadd.s32 %s234, %s235
      %s237 = smul.addr %s236, 4
      %s238 = scalar_lea.vmem %s0, %s237
      %s239 = smul.u32 4, %s21
      %s240 = smul.u32 64, %s21
      %p241 = scmp.lt.s32.totalorder %s240, 63
      %s242 = scalar_select %p241, %s240, 63
      %p243 = scmp.lt.s32.totalorder %s20, 0
      %s244 = scalar_select %p243, %s20, 0
      %s245 = sadd.s32 %s244, %s242
      %s246 = smul.addr %s245, 4
      %s247 = scalar_lea.vmem %s1, %s246
      %s248 = smul.u32 64, %s21
      %p249 = scmp.lt.s32.totalorder %s20, 0
      %s250 = scalar_select %p249, %s20, 0
      %s251 = scalar_lea.vmem %s2, %s250
      %p252 = scmp.lt.s32.totalorder %s19, 2
      %s253 = scalar_select %p252, %s19, 2
      %p254 = scmp.lt.s32.totalorder %s20, 0
      %s255 = scalar_select %p254, %s20, 0
      %s256 = sadd.s32 %s255, %s253
      %s257 = smul.addr %s256, 4
      %s258 = scalar_lea.vmem %s3, %s257
      %p260 = scmp.eq.s32.totalorder %s21, 0
      // Predicated region
      $region33: #{forward.6} parent=31 // pred_check
        %p261 = pneg %p260
      $region34: #{forward.6} parent=31 // pred_check_branch
        %263 = sbr.rel (%p261) target = $region36
      $region35: #{forward.6} parent=31 // pred_region
        %vm264 = vcmask 523264
        %265 = vst.msk [vmem:[#allocation2] sm:$0xff] %vm264, 0.0
      $region36: #{forward.6} parent=31 // pred_fallthru
        _
      %v266 = vld [vmem:[#allocation2] sm:$0xff]
      %v267 = vld [vmem:[%s238] sm:$0xff]
      %v268 = vld [vmem:[%s238 + $0x8] sm:$0xff]
      %v269 = vld [vmem:[%s247] sm:$0xf]
      %v270 = vld [vmem:[%s247 + $0x4] sm:$0xf]
      %v271 = vld [vmem:[%s247 + $0x8] sm:$0xf]
      %v272 = vld [vmem:[%s247 + $0xc] sm:$0xf]
      %v273 = vld [vmem:[%s247 + $0x10] sm:$0xf]
      %v274 = vld [vmem:[%s247 + $0x14] sm:$0xf]
      %v275 = vld [vmem:[%s247 + $0x18] sm:$0xf]
      %v276 = vld [vmem:[%s247 + $0x1c] sm:$0xf]
      %v277 = vld [vmem:[%s247 + $0x20] sm:$0xf]
      %v278 = vld [vmem:[%s247 + $0x24] sm:$0xf]
      %v279 = vld [vmem:[%s247 + $0x28] sm:$0xf]
      %v280 = vld [vmem:[%s247 + $0x2c] sm:$0xf]
      %v281 = vld [vmem:[%s247 + $0x30] sm:$0xf]
      %v282 = vld [vmem:[%s247 + $0x34] sm:$0xf]
      %v283 = vld [vmem:[%s247 + $0x38] sm:$0xf]
      %v284 = vld [vmem:[%s247 + $0x3c] sm:$0xf]
      %v285 = vld [vmem:[%s247 + $0x40] sm:$0xf]
      %v286 = vld [vmem:[%s247 + $0x44] sm:$0xf]
      %v287 = vld [vmem:[%s247 + $0x48] sm:$0xf]
      %v288 = vld [vmem:[%s247 + $0x4c] sm:$0xf]
      %v289 = vld [vmem:[%s247 + $0x50] sm:$0xf]
      %v290 = vld [vmem:[%s247 + $0x54] sm:$0xf]
      %v291 = vld [vmem:[%s247 + $0x58] sm:$0xf]
      %v292 = vld [vmem:[%s247 + $0x5c] sm:$0xf]
      %v293 = vld [vmem:[%s247 + $0x60] sm:$0xf]
      %v294 = vld [vmem:[%s247 + $0x64] sm:$0xf]
      %v295 = vld [vmem:[%s247 + $0x68] sm:$0xf]
      %v296 = vld [vmem:[%s247 + $0x6c] sm:$0xf]
      %v297 = vld [vmem:[%s247 + $0x70] sm:$0xf]
      %v298 = vld [vmem:[%s247 + $0x74] sm:$0xf]
      %v299 = vld [vmem:[%s247 + $0x78] sm:$0xf]
      %v300 = vld [vmem:[%s247 + $0x7c] sm:$0xf]
      %v301 = vld [vmem:[%s247 + $0x80] sm:$0xf]
      %v302 = vld [vmem:[%s247 + $0x84] sm:$0xf]
      %v303 = vld [vmem:[%s247 + $0x88] sm:$0xf]
      %v304 = vld [vmem:[%s247 + $0x8c] sm:$0xf]
      %v305 = vld [vmem:[%s247 + $0x90] sm:$0xf]
      %v306 = vld [vmem:[%s247 + $0x94] sm:$0xf]
      %v307 = vld [vmem:[%s247 + $0x98] sm:$0xf]
      %v308 = vld [vmem:[%s247 + $0x9c] sm:$0xf]
      %v309 = vld [vmem:[%s247 + $0xa0] sm:$0xf]
      %v310 = vld [vmem:[%s247 + $0xa4] sm:$0xf]
      %v311 = vld [vmem:[%s247 + $0xa8] sm:$0xf]
      %v312 = vld [vmem:[%s247 + $0xac] sm:$0xf]
      %v313 = vld [vmem:[%s247 + $0xb0] sm:$0xf]
      %v314 = vld [vmem:[%s247 + $0xb4] sm:$0xf]
      %v315 = vld [vmem:[%s247 + $0xb8] sm:$0xf]
      %v316 = vld [vmem:[%s247 + $0xbc] sm:$0xf]
      %v317 = vld [vmem:[%s247 + $0xc0] sm:$0xf]
      %v318 = vld [vmem:[%s247 + $0xc4] sm:$0xf]
      %v319 = vld [vmem:[%s247 + $0xc8] sm:$0xf]
      %v320 = vld [vmem:[%s247 + $0xcc] sm:$0xf]
      %v321 = vld [vmem:[%s247 + $0xd0] sm:$0xf]
      %v322 = vld [vmem:[%s247 + $0xd4] sm:$0xf]
      %v323 = vld [vmem:[%s247 + $0xd8] sm:$0xf]
      %v324 = vld [vmem:[%s247 + $0xdc] sm:$0xf]
      %v325 = vld [vmem:[%s247 + $0xe0] sm:$0xf]
      %v326 = vld [vmem:[%s247 + $0xe4] sm:$0xf]
      %v327 = vld [vmem:[%s247 + $0xe8] sm:$0xf]
      %v328 = vld [vmem:[%s247 + $0xec] sm:$0xf]
      %v329 = vld [vmem:[%s247 + $0xf0] sm:$0xf]
      %v330 = vld [vmem:[%s247 + $0xf4] sm:$0xf]
      %v331 = vld [vmem:[%s247 + $0xf8] sm:$0xf]
      %v332 = vld [vmem:[%s247 + $0xfc] sm:$0xf]
      %v335 = vunpack.c.l.b16 %v267
      %v336 = vunpack.c.h.b16 %v267
      %v337 = vunpack.c.l.b16 %v268
      %v338 = vunpack.c.h.b16 %v268
      %v339 = vpack.c.b16 %v335, %v335
      %v340 = vpack.c.b16 %v336, %v336
      %v341 = vpack.c.b16 %v337, %v337
      %v342 = vpack.c.b16 %v338, %v338
      %v411 = vunpack.c.l.b16 %v269
      %v412 = vunpack.c.l.b16 %v270
      %v413 = vunpack.c.l.b16 %v271
      %v414 = vunpack.c.l.b16 %v272
      %v415 = vunpack.c.l.b16 %v273
      %v416 = vunpack.c.l.b16 %v274
      %v417 = vunpack.c.l.b16 %v275
      %v418 = vunpack.c.l.b16 %v276
      %v419 = vunpack.c.l.b16 %v277
      %v420 = vunpack.c.l.b16 %v278
      %v421 = vunpack.c.l.b16 %v279
      %v422 = vunpack.c.l.b16 %v280
      %v423 = vunpack.c.l.b16 %v281
      %v424 = vunpack.c.l.b16 %v282
      %v425 = vunpack.c.l.b16 %v283
      %v426 = vunpack.c.l.b16 %v284
      %v427 = vunpack.c.l.b16 %v285
      %v428 = vunpack.c.l.b16 %v286
      %v429 = vunpack.c.l.b16 %v287
      %v430 = vunpack.c.l.b16 %v288
      %v431 = vunpack.c.l.b16 %v289
      %v432 = vunpack.c.l.b16 %v290
      %v433 = vunpack.c.l.b16 %v291
      %v434 = vunpack.c.l.b16 %v292
      %v435 = vunpack.c.l.b16 %v293
      %v436 = vunpack.c.l.b16 %v294
      %v437 = vunpack.c.l.b16 %v295
      %v438 = vunpack.c.l.b16 %v296
      %v439 = vunpack.c.l.b16 %v297
      %v440 = vunpack.c.l.b16 %v298
      %v441 = vunpack.c.l.b16 %v299
      %v442 = vunpack.c.l.b16 %v300
      %v443 = vunpack.c.l.b16 %v301
      %v444 = vunpack.c.l.b16 %v302
      %v445 = vunpack.c.l.b16 %v303
      %v446 = vunpack.c.l.b16 %v304
      %v447 = vunpack.c.l.b16 %v305
      %v448 = vunpack.c.l.b16 %v306
      %v449 = vunpack.c.l.b16 %v307
      %v450 = vunpack.c.l.b16 %v308
      %v451 = vunpack.c.l.b16 %v309
      %v452 = vunpack.c.l.b16 %v310
      %v453 = vunpack.c.l.b16 %v311
      %v454 = vunpack.c.l.b16 %v312
      %v455 = vunpack.c.l.b16 %v313
      %v456 = vunpack.c.l.b16 %v314
      %v457 = vunpack.c.l.b16 %v315
      %v458 = vunpack.c.l.b16 %v316
      %v459 = vunpack.c.l.b16 %v317
      %v460 = vunpack.c.l.b16 %v318
      %v461 = vunpack.c.l.b16 %v319
      %v462 = vunpack.c.l.b16 %v320
      %v463 = vunpack.c.l.b16 %v321
      %v464 = vunpack.c.l.b16 %v322
      %v465 = vunpack.c.l.b16 %v323
      %v466 = vunpack.c.l.b16 %v324
      %v467 = vunpack.c.l.b16 %v325
      %v468 = vunpack.c.l.b16 %v326
      %v469 = vunpack.c.l.b16 %v327
      %v470 = vunpack.c.l.b16 %v328
      %v471 = vunpack.c.l.b16 %v329
      %v472 = vunpack.c.l.b16 %v330
      %v473 = vunpack.c.l.b16 %v331
      %v474 = vunpack.c.l.b16 %v332
      %v475 = vpack.c.b16 %v412, %v411
      %v476 = vpack.c.b16 %v414, %v413
      %v477 = vpack.c.b16 %v416, %v415
      %v478 = vpack.c.b16 %v418, %v417
      %v479 = vpack.c.b16 %v420, %v419
      %v480 = vpack.c.b16 %v422, %v421
      %v481 = vpack.c.b16 %v424, %v423
      %v482 = vpack.c.b16 %v426, %v425
      %v483 = vpack.c.b16 %v428, %v427
      %v484 = vpack.c.b16 %v430, %v429
      %v485 = vpack.c.b16 %v432, %v431
      %v486 = vpack.c.b16 %v434, %v433
      %v487 = vpack.c.b16 %v436, %v435
      %v488 = vpack.c.b16 %v438, %v437
      %v489 = vpack.c.b16 %v440, %v439
      %v490 = vpack.c.b16 %v442, %v441
      %v491 = vpack.c.b16 %v444, %v443
      %v492 = vpack.c.b16 %v446, %v445
      %v493 = vpack.c.b16 %v448, %v447
      %v494 = vpack.c.b16 %v450, %v449
      %v495 = vpack.c.b16 %v452, %v451
      %v496 = vpack.c.b16 %v454, %v453
      %v497 = vpack.c.b16 %v456, %v455
      %v498 = vpack.c.b16 %v458, %v457
      %v499 = vpack.c.b16 %v460, %v459
      %v500 = vpack.c.b16 %v462, %v461
      %v501 = vpack.c.b16 %v464, %v463
      %v502 = vpack.c.b16 %v466, %v465
      %v503 = vpack.c.b16 %v468, %v467
      %v504 = vpack.c.b16 %v470, %v469
      %v505 = vpack.c.b16 %v472, %v471
      %v506 = vpack.c.b16 %v474, %v473
      %539 = vmatprep.subr.bf16.mxu0 0
      %540 = vmatpush1.bf16.msra.mxu0 %v482
      %541 = vmatprep.subr.bf16.mxu0 0
      %542 = vmatpush1.bf16.msra.mxu0 %v481
      %543 = vmatprep.subr.bf16.mxu0 0
      %544 = vmatpush1.bf16.msra.mxu0 %v480
      %545 = vmatprep.subr.bf16.mxu0 0
      %546 = vmatpush1.bf16.msra.mxu0 %v479
      %547 = vmatprep.subr.bf16.mxu0 0
      %548 = vmatpush1.bf16.msra.mxu0 %v478
      %549 = vmatprep.subr.bf16.mxu0 0
      %550 = vmatpush1.bf16.msra.mxu0 %v477
      %551 = vmatprep.subr.bf16.mxu0 0
      %552 = vmatpush1.bf16.msra.mxu0 %v476
      %553 = vmatprep.subr.bf16.mxu0 0
      %554 = vmatpush1.bf16.msra.mxu0 %v475
      %555 = vmatprep.subr.bf16.mxu0 0
      %556 = vmatpush2.bf16.msra.mxu0 %v490
      %557 = vmatprep.subr.bf16.mxu0 0
      %558 = vmatpush2.bf16.msra.mxu0 %v489
      %559 = vmatprep.subr.bf16.mxu0 0
      %560 = vmatpush2.bf16.msra.mxu0 %v488
      %561 = vmatprep.subr.bf16.mxu0 0
      %562 = vmatpush2.bf16.msra.mxu0 %v487
      %563 = vmatprep.subr.bf16.mxu0 0
      %564 = vmatpush2.bf16.msra.mxu0 %v486
      %565 = vmatprep.subr.bf16.mxu0 0
      %566 = vmatpush2.bf16.msra.mxu0 %v485
      %567 = vmatprep.subr.bf16.mxu0 0
      %568 = vmatpush2.bf16.msra.mxu0 %v484
      %569 = vmatprep.subr.bf16.mxu0 0
      %570 = vmatpush2.bf16.msra.mxu0 %v483
      %571 = vmatprep.mubr.bf16.mxu0 %v340
      %572 = vmatmul.mubr.bf16.gmra.mxu0 %v339
      %v573 = vpop.f32.mrf.mxu0
      %v574 = vadd.f32 0.0, %v573
      %v575 = vpop.f32.mrf.mxu0
      %v576 = vpop.f32.mrf.mxu0
      %v577 = vpop.f32.mrf.mxu0
      %578 = vdwg.mxu0
      %579 = vmatprep.subr.bf16.mxu0 0
      %580 = vmatpush1.bf16.msra.mxu0 %v498
      %581 = vmatprep.subr.bf16.mxu0 0
      %582 = vmatpush1.bf16.msra.mxu0 %v497
      %583 = vmatprep.subr.bf16.mxu0 0
      %584 = vmatpush1.bf16.msra.mxu0 %v496
      %585 = vmatprep.subr.bf16.mxu0 0
      %586 = vmatpush1.bf16.msra.mxu0 %v495
      %587 = vmatprep.subr.bf16.mxu0 0
      %588 = vmatpush1.bf16.msra.mxu0 %v494
      %589 = vmatprep.subr.bf16.mxu0 0
      %590 = vmatpush1.bf16.msra.mxu0 %v493
      %591 = vmatprep.subr.bf16.mxu0 0
      %592 = vmatpush1.bf16.msra.mxu0 %v492
      %593 = vmatprep.subr.bf16.mxu0 0
      %594 = vmatpush1.bf16.msra.mxu0 %v491
      %595 = vmatprep.subr.bf16.mxu0 0
      %596 = vmatpush2.bf16.msra.mxu0 %v506
      %597 = vmatprep.subr.bf16.mxu0 0
      %598 = vmatpush2.bf16.msra.mxu0 %v505
      %599 = vmatprep.subr.bf16.mxu0 0
      %600 = vmatpush2.bf16.msra.mxu0 %v504
      %601 = vmatprep.subr.bf16.mxu0 0
      %602 = vmatpush2.bf16.msra.mxu0 %v503
      %603 = vmatprep.subr.bf16.mxu0 0
      %604 = vmatpush2.bf16.msra.mxu0 %v502
      %605 = vmatprep.subr.bf16.mxu0 0
      %606 = vmatpush2.bf16.msra.mxu0 %v501
      %607 = vmatprep.subr.bf16.mxu0 0
      %608 = vmatpush2.bf16.msra.mxu0 %v500
      %609 = vmatprep.subr.bf16.mxu0 0
      %610 = vmatpush2.bf16.msra.mxu0 %v499
      %611 = vmatprep.mubr.bf16.mxu0 %v342
      %612 = vmatmul.mubr.bf16.gmra.mxu0 %v341
      %v613 = vpop.f32.mrf.mxu0
      %v614 = vadd.f32 %v574, %v613
      %v615 = vpop.f32.mrf.mxu0
      %v616 = vpop.f32.mrf.mxu0
      %v617 = vpop.f32.mrf.mxu0
      %618 = vdwg.mxu0
      %v619 = vadd.f32 %v266, %v614
      %vm620 = vcmask 523264
      %621 = vst.msk [vmem:[#allocation2] sm:$0xff] %vm620, %v619
      // Predicated region
      $region37: #{forward.6} parent=31 // pred_check
        %p622 = pneg %p260
      $region38: #{forward.6} parent=31 // pred_check_branch
        %624 = sbr.rel (%p622) target = $region40
      $region39: #{forward.6} parent=31 // pred_region
        %v625 = vld [vmem:[#allocation2] sm:$0xff]
        %v626 = vld [vmem:[%s251] sm:$0x1]
        %v628 = vlaneseq
        %v629 = vshrl.u32 %v628, 7
        %v630 = vsub.s32 0, %v629
        %v631 = vrot.slane %v626, %v630
        %v633 = vadd.f32 %v625, %v631
        %v634 = vmax.f32 %v633, 0.0
        %v635 = vpack.c.bf16 %v634, %v634
        %vm636 = vcmask 519168
        %637 = vst.msk [vmem:[%s258] sm:$0xf] %vm636, %v635
      $region40: #{forward.6} parent=31 // pred_fallthru
        _
      %p638 = scmp.lt.s32.totalorder %s19, 2
      %s639 = scalar_select %p638, %s19, 2
      %p640 = scmp.lt.s32.totalorder %s20, 0
      %s641 = scalar_select %p640, %s20, 0
      %s642 = sadd.s32 %s641, %s639
      %s643 = smul.addr %s642, 4
      %s644 = scalar_lea.vmem %s3, %s643
      // Predicated region
      $region41: #{forward.6} parent=31 // pred_check
        %p645 = pneg %p135
      $region42: #{forward.6} parent=31 // pred_check_branch
        %647 = sbr.rel (%p645) target = $region44
      $region43: #{forward.6} parent=31 // pred_region
        _
      $region44: #{forward.6} parent=31 // pred_fallthru
        _
    $region32: #{forward.6} parent=5 // pred_fallthru
      _
    %p648 = scmp.le.s32.totalorder 2, %s9
    // Predicated region
    $region45: #{forward.6} parent=5 // pred_check
      %p649 = pneg %p648
    $region46: #{forward.6} parent=5 // pred_check_branch
      %651 = sbr.rel (%p649) target = $region48
    $region47: #{forward.6} parent=5 // pred_region
      %s652 = ssub.s32 %s9, 2
      // Predicated region
      $region49: #{forward.6} parent=47 // pred_check
        %p653 = pneg %p141
      $region50: #{forward.6} parent=47 // pred_check_branch
        %655 = sbr.rel (%p653) target = $region52
      $region51: #{forward.6} parent=47 // pred_region
        %p656 = scmp.lt.s32.totalorder %s22, 2
        %s657 = scalar_select %p656, %s22, 2
        %p658 = scmp.lt.s32.totalorder %s23, 0
        %s659 = scalar_select %p658, %s23, 0
        %s660 = sadd.s32 %s659, %s657
        %s661 = smul.addr %s660, 4
        %s662 = scalar_lea.vmem %s3, %s661
      $region52: #{forward.6} parent=47 // pred_fallthru
        _
    $region48: #{forward.6} parent=5 // pred_fallthru
      _
  $region6: #{forward.6} parent=0 // loop_footer
    %s13 = sadd.s32 1, %s9
  $region7: #{forward.6} parent=0 // loop_footer_branch
    %8 = sbr.rel target = $region3
  $region8: #{forward.6} parent=0 // loop_exit
    _

// kernel: forward.7
$region0: #{forward.7}
  #allocation0 [shape = 'u32[]', space=smem, size = 0x4, offset = 0x4, fixed_abs, tag = 'smem constant byte address 0x4 - core index']
  #allocation1 [shape = 'u32[144,128]{1,0:T(1,128)}', space=vmem, size = 0x12000, scoped, tag = 'internal scratch']
  #allocation2 [shape = 'f32[8,64]{1,0:T(8,128)}', space=vmem, size = 0x1000, scoped, tag = 'scratch operand']
  %s0 = inlined_call_operand.vmem [shape: bf16[8,640], index: 0, kind: input, shape index: {}]
  %s1 = inlined_call_operand.vmem [shape: bf16[640,64], index: 1, kind: input, shape index: {}]
  %s2 = inlined_call_operand.vmem [shape: f32[1,64], index: 2, kind: input, shape index: {}]
  %s3 = inlined_call_operand.vmem [shape: bf16[8,64], index: 3, kind: output, shape index: {}]
  %s4 = sld [smem:[#allocation0]]
  $region53: #{forward.7} parent=0
    _
  %s6 = ssub.s32 1, %s4
  %s7 = scalar_select 0, %s6, %s4
  loop: start=0, step=1, limit=7
  $region2: #{forward.7} parent=0 // loop_pre_header
    _
  $region3: #{forward.7} parent=0 // loop_header
    %s9 = sphi 0, %s13
    %p10 = scmp.ge.s32.totalorder %s9, 7
    %s16 = sphi 0, %s35
    %s17 = sphi 0, %s31
    %s18 = sphi 0, %s27
    %s19 = sphi 0, %s16
    %s20 = sphi 0, %s17
    %s21 = sphi 0, %s18
    %s22 = sphi 0, %s19
    %s23 = sphi 0, %s20
    %s24 = sphi 0, %s21
    %s40 = sphi 0, %s42
    %s43 = sphi 0, %s40
    %s44 = sphi 0, %s43
    %s60 = sphi 0, %s44
    %s68 = sphi 0, %s70
    %s71 = sphi 0, %s68
    %s72 = sphi 0, %s71
    %s88 = sphi 0, %s72
    %s94 = sphi 0, %s96
    %s97 = sphi 0, %s94
    %s98 = sphi 0, %s97
    %s114 = sphi 0, %s98
    %s122 = sphi 0, %s124
    %s125 = sphi 0, %s122
    %s126 = sphi 0, %s125
    %s142 = sphi 0, %s126
  $region4: #{forward.7} parent=0 // loop_header_branch
    %12 = sbr.rel (%p10) target = $region8
  $region5: #{forward.7} parent=0 // loop_body
    %s14 = ssub.s32 %s9, 1
    %s15 = ssub.s32 %s9, 2
    %s25 = sadd.s32 1, %s18
    %p26 = scmp.ge.s32.totalorder %s25, 5
    %s27 = scalar_select %p26, 0, %s25
    %s28 = sadd.s32 1, %s17
    %s29 = scalar_select %p26, %s28, %s17
    %p30 = scmp.ge.s32.totalorder %s29, 1
    %s31 = scalar_select %p30, 0, %s29
    %s32 = sadd.s32 1, %s16
    %s33 = scalar_select %p30, %s32, %s16
    %p34 = scmp.ge.s32.totalorder %s33, 1
    %s35 = scalar_select %p34, 0, %s33
    %s36 = ssub.s32 %s16, %s35
    %s37 = ssub.s32 %s18, %s27
    %s38 = sor.u32 %s36, %s37
    %p39 = scmp.eq.s32.totalorder %s38, 0
    %s41 = sadd.s32 %s40, 1
    %s42 = scalar_select %p39, %s40, %s41
    %p45 = pneg %p39
    %p46 = scmp.eq.s32.totalorder %s9, 4
    %p47 = por %p45, %p46
    %p48 = scmp.ne.s32.totalorder %s40, %s43
    %p49 = scmp.eq.s32.totalorder %s9, 0
    %p50 = por %p48, %p49
    %p51 = scmp.ne.s32.totalorder %s40, %s43
    %p52 = scmp.eq.s32.totalorder %s14, 4
    %p53 = por %p51, %p52
    %p54 = scmp.ne.s32.totalorder %s43, %s44
    %p55 = scmp.eq.s32.totalorder %s14, 0
    %p56 = por %p54, %p55
    %p57 = scmp.ne.s32.totalorder %s43, %s44
    %p58 = scmp.eq.s32.totalorder %s15, 4
    %p59 = por %p57, %p58
    %p61 = scmp.ne.s32.totalorder %s44, %s60
    %p62 = scmp.eq.s32.totalorder %s15, 0
    %p63 = por %p61, %p62
    %s64 = ssub.s32 %s18, %s27
    %s65 = ssub.s32 %s17, %s31
    %s66 = sor.u32 %s64, %s65
    %p67 = scmp.eq.s32.totalorder %s66, 0
    %s69 = sadd.s32 %s68, 1
    %s70 = scalar_select %p67, %s68, %s69
    %p73 = pneg %p67
    %p74 = scmp.eq.s32.totalorder %s9, 4
    %p75 = por %p73, %p74
    %p76 = scmp.ne.s32.totalorder %s68, %s71
    %p77 = scmp.eq.s32.totalorder %s9, 0
    %p78 = por %p76, %p77
    %p79 = scmp.ne.s32.totalorder %s68, %s71
    %p80 = scmp.eq.s32.totalorder %s14, 4
    %p81 = por %p79, %p80
    %p82 = scmp.ne.s32.totalorder %s71, %s72
    %p83 = scmp.eq.s32.totalorder %s14, 0
    %p84 = por %p82, %p83
    %p85 = scmp.ne.s32.totalorder %s71, %s72
    %p86 = scmp.eq.s32.totalorder %s15, 4
    %p87 = por %p85, %p86
    %p89 = scmp.ne.s32.totalorder %s72, %s88
    %p90 = scmp.eq.s32.totalorder %s15, 0
    %p91 = por %p89, %p90
    %s92 = ssub.s32 %s17, %s31
    %p93 = scmp.eq.s32.totalorder %s92, 0
    %s95 = sadd.s32 %s94, 1
    %s96 = scalar_select %p93, %s94, %s95
    %p99 = pneg %p93
    %p100 = scmp.eq.s32.totalorder %s9, 4
    %p101 = por %p99, %p100
    %p102 = scmp.ne.s32.totalorder %s94, %s97
    %p103 = scmp.eq.s32.totalorder %s9, 0
    %p104 = por %p102, %p103
    %p105 = scmp.ne.s32.totalorder %s94, %s97
    %p106 = scmp.eq.s32.totalorder %s14, 4
    %p107 = por %p105, %p106
    %p108 = scmp.ne.s32.totalorder %s97, %s98
    %p109 = scmp.eq.s32.totalorder %s14, 0
    %p110 = por %p108, %p109
    %p111 = scmp.ne.s32.totalorder %s97, %s98
    %p112 = scmp.eq.s32.totalorder %s15, 4
    %p113 = por %p111, %p112
    %p115 = scmp.ne.s32.totalorder %s98, %s114
    %p116 = scmp.eq.s32.totalorder %s15, 0
    %p117 = por %p115, %p116
    %s118 = ssub.s32 %s16, %s35
    %s119 = ssub.s32 %s17, %s31
    %s120 = sor.u32 %s118, %s119
    %p121 = scmp.eq.s32.totalorder %s120, 0
    %s123 = sadd.s32 %s122, 1
    %s124 = scalar_select %p121, %s122, %s123
    %p127 = pneg %p121
    %p128 = scmp.eq.s32.totalorder %s9, 4
    %p129 = por %p127, %p128
    %p130 = scmp.ne.s32.totalorder %s122, %s125
    %p131 = scmp.eq.s32.totalorder %s9, 0
    %p132 = por %p130, %p131
    %p133 = scmp.ne.s32.totalorder %s122, %s125
    %p134 = scmp.eq.s32.totalorder %s14, 4
    %p135 = por %p133, %p134
    %p136 = scmp.ne.s32.totalorder %s125, %s126
    %p137 = scmp.eq.s32.totalorder %s14, 0
    %p138 = por %p136, %p137
    %p139 = scmp.ne.s32.totalorder %s125, %s126
    %p140 = scmp.eq.s32.totalorder %s15, 4
    %p141 = por %p139, %p140
    %p143 = scmp.ne.s32.totalorder %s126, %s142
    %p144 = scmp.eq.s32.totalorder %s15, 0
    %p145 = por %p143, %p144
    %p146 = scmp.le.s32.totalorder 1, %s9
    %p147 = scmp.lt.s32.totalorder %s9, 6
    %p148 = pnand %p146, %p147
    %p149 = pneg %p148
    // Predicated region
    $region9: #{forward.7} parent=5 // pred_check
      _
    $region10: #{forward.7} parent=5 // pred_check_branch
      %151 = sbr.rel (%p148) target = $region12
    $region11: #{forward.7} parent=5 // pred_region
      %s152 = ssub.s32 %s9, 1
      // Predicated region
      $region13: #{forward.7} parent=11 // pred_check
        %p153 = pneg %p110
      $region14: #{forward.7} parent=11 // pred_check_branch
        %155 = sbr.rel (%p153) target = $region16
      $region15: #{forward.7} parent=11 // pred_region
        %p156 = scmp.lt.s32.totalorder %s20, 0
        %s157 = scalar_select %p156, %s20, 0
        %s158 = scalar_lea.vmem %s2, %s157
      $region16: #{forward.7} parent=11 // pred_fallthru
        _
    $region12: #{forward.7} parent=5 // pred_fallthru
      _
    %p159 = scmp.lt.s32.totalorder %s9, 5
    // Predicated region
    $region17: #{forward.7} parent=5 // pred_check
      %p160 = pneg %p159
    $region18: #{forward.7} parent=5 // pred_check_branch
      %162 = sbr.rel (%p160) target = $region20
    $region19: #{forward.7} parent=5 // pred_region
      // Predicated region
      $region21: #{forward.7} parent=19 // pred_check
        %p163 = pneg %p50
      $region22: #{forward.7} parent=19 // pred_check_branch
        %165 = sbr.rel (%p163) target = $region24
      $region23: #{forward.7} parent=19 // pred_region
        %p166 = scmp.lt.s32.totalorder %s16, 0
        %s167 = scalar_select %p166, %s16, 0
        %p168 = scmp.lt.s32.totalorder %s18, 4
        %s169 = scalar_select %p168, %s18, 4
        %s170 = smul.addr %s167, 5
        %s171 = sadd.s32 %s169, %s170
        %s172 = smul.addr %s171, 4
        %s173 = scalar_lea.vmem %s0, %s172
      $region24: #{forward.7} parent=19 // pred_fallthru
        _
      // Predicated region
      $region25: #{forward.7} parent=19 // pred_check
        %p174 = pneg %p78
      $region26: #{forward.7} parent=19 // pred_check_branch
        %176 = sbr.rel (%p174) target = $region28
      $region27: #{forward.7} parent=19 // pred_region
        %s177 = smul.u32 16, %s18
        %p178 = scmp.lt.s32.totalorder %s177, 79
        %s179 = scalar_select %p178, %s177, 79
        %p180 = scmp.lt.s32.totalorder %s17, 0
        %s181 = scalar_select %p180, %s17, 0
        %s182 = sadd.s32 %s181, %s179
        %s183 = smul.addr %s182, 4
        %s184 = scalar_lea.vmem %s1, %s183
        %s185 = smul.u32 16, %s18
      $region28: #{forward.7} parent=19 // pred_fallthru
        _
    $region20: #{forward.7} parent=5 // pred_fallthru
      _
    %p186 = scmp.le.s32.totalorder 1, %s9
    %p187 = scmp.lt.s32.totalorder %s9, 6
    %p188 = pnand %p186, %p187
    %p189 = pneg %p188
    // Predicated region
    $region29: #{forward.7} parent=5 // pred_check
      _
    $region30: #{forward.7} parent=5 // pred_check_branch
      %191 = sbr.rel (%p188) target = $region32
    $region31: #{forward.7} parent=5 // pred_region
      %s192 = ssub.s32 %s9, 1
      %p193 = scmp.lt.s32.totalorder %s19, 0
      %s194 = scalar_select %p193, %s19, 0
      %p195 = scmp.lt.s32.totalorder %s21, 4
      %s196 = scalar_select %p195, %s21, 4
      %s197 = smul.addr %s194, 5
      %s198 = sadd.s32 %s196, %s197
      %s199 = smul.addr %s198, 4
      %s200 = scalar_lea.vmem %s0, %s199
      %p201 = pneg %p56
      %p202 = pneg %p53
      %s203 = smul.u32 16, %s21
      %p204 = scmp.lt.s32.totalorder %s203, 79
      %s205 = scalar_select %p204, %s203, 79
      %p206 = scmp.lt.s32.totalorder %s20, 0
      %s207 = scalar_select %p206, %s20, 0
      %s208 = sadd.s32 %s207, %s205
      %s209 = smul.addr %s208, 4
      %s210 = scalar_lea.vmem %s1, %s209
      %p211 = pneg %p84
      %p212 = pneg %p81
      %p213 = scmp.lt.s32.totalorder %s20, 0
      %s214 = scalar_select %p213, %s20, 0
      %s215 = scalar_lea.vmem %s2, %s214
      %p216 = pneg %p110
      %p217 = pneg %p107
      %p218 = pneg %p138
      %p219 = pneg %p135
      %p220 = scmp.lt.s32.totalorder %s19, 0
      %s221 = scalar_select %p220, %s19, 0
      %p222 = scmp.lt.s32.totalorder %s20, 0
      %s223 = scalar_select %p222, %s20, 0
      %s224 = sadd.s32 %s223, %s221
      %s225 = smul.addr %s224, 4
      %s226 = scalar_lea.vmem %s3, %s225
      %p227 = scmp.lt.s32.totalorder %s19, 0
      %s228 = scalar_select %p227, %s19, 0
      %p229 = scmp.lt.s32.totalorder %s21, 4
      %s230 = scalar_select %p229, %s21, 4
      %s231 = smul.addr %s228, 5
      %s232 = sadd.s32 %s230, %s231
      %s233 = smul.addr %s232, 4
      %s234 = scalar_lea.vmem %s0, %s233
      %s235 = smul.u32 16, %s21
      %p236 = scmp.lt.s32.totalorder %s235, 79
      %s237 = scalar_select %p236, %s235, 79
      %p238 = scmp.lt.s32.totalorder %s20, 0
      %s239 = scalar_select %p238, %s20, 0
      %s240 = sadd.s32 %s239, %s237
      %s241 = smul.addr %s240, 4
      %s242 = scalar_lea.vmem %s1, %s241
      %s243 = smul.u32 16, %s21
      %p244 = scmp.lt.s32.totalorder %s20, 0
      %s245 = scalar_select %p244, %s20, 0
      %s246 = scalar_lea.vmem %s2, %s245
      %p247 = scmp.lt.s32.totalorder %s19, 0
      %s248 = scalar_select %p247, %s19, 0
      %p249 = scmp.lt.s32.totalorder %s20, 0
      %s250 = scalar_select %p249, %s20, 0
      %s251 = sadd.s32 %s250, %s248
      %s252 = smul.addr %s251, 4
      %s253 = scalar_lea.vmem %s3, %s252
      %p255 = scmp.eq.s32.totalorder %s21, 0
      // Predicated region
      $region33: #{forward.7} parent=31 // pred_check
        %p256 = pneg %p255
      $region34: #{forward.7} parent=31 // pred_check_branch
        %258 = sbr.rel (%p256) target = $region36
      $region35: #{forward.7} parent=31 // pred_region
        %vm259 = vcmask 523264
        %260 = vst.msk [vmem:[#allocation2] sm:$0xff] %vm259, 0.0
      $region36: #{forward.7} parent=31 // pred_fallthru
        _
      %v261 = vld [vmem:[#allocation2] sm:$0xff]
      %v262 = vld [vmem:[%s234] sm:$0xf]
      %v263 = vld [vmem:[%s242] sm:$0xf]
      %v264 = vld [vmem:[%s242 + $0x4] sm:$0xf]
      %v265 = vld [vmem:[%s242 + $0x8] sm:$0xf]
      %v266 = vld [vmem:[%s242 + $0xc] sm:$0xf]
      %v267 = vld [vmem:[%s242 + $0x10] sm:$0xf]
      %v268 = vld [vmem:[%s242 + $0x14] sm:$0xf]
      %v269 = vld [vmem:[%s242 + $0x18] sm:$0xf]
      %v270 = vld [vmem:[%s242 + $0x1c] sm:$0xf]
      %v271 = vld [vmem:[%s242 + $0x20] sm:$0xf]
      %v272 = vld [vmem:[%s242 + $0x24] sm:$0xf]
      %v273 = vld [vmem:[%s242 + $0x28] sm:$0xf]
      %v274 = vld [vmem:[%s242 + $0x2c] sm:$0xf]
      %v275 = vld [vmem:[%s242 + $0x30] sm:$0xf]
      %v276 = vld [vmem:[%s242 + $0x34] sm:$0xf]
      %v277 = vld [vmem:[%s242 + $0x38] sm:$0xf]
      %v278 = vld [vmem:[%s242 + $0x3c] sm:$0xf]
      %v295 = vunpack.c.l.b16 %v263
      %v296 = vunpack.c.l.b16 %v264
      %v297 = vunpack.c.l.b16 %v265
      %v298 = vunpack.c.l.b16 %v266
      %v299 = vunpack.c.l.b16 %v267
      %v300 = vunpack.c.l.b16 %v268
      %v301 = vunpack.c.l.b16 %v269
      %v302 = vunpack.c.l.b16 %v270
      %v303 = vunpack.c.l.b16 %v271
      %v304 = vunpack.c.l.b16 %v272
      %v305 = vunpack.c.l.b16 %v273
      %v306 = vunpack.c.l.b16 %v274
      %v307 = vunpack.c.l.b16 %v275
      %v308 = vunpack.c.l.b16 %v276
      %v309 = vunpack.c.l.b16 %v277
      %v310 = vunpack.c.l.b16 %v278
      %v311 = vpack.c.b16 %v296, %v295
      %v312 = vpack.c.b16 %v298, %v297
      %v313 = vpack.c.b16 %v300, %v299
      %v314 = vpack.c.b16 %v302, %v301
      %v315 = vpack.c.b16 %v304, %v303
      %v316 = vpack.c.b16 %v306, %v305
      %v317 = vpack.c.b16 %v308, %v307
      %v318 = vpack.c.b16 %v310, %v309
      %327 = vmatprep.subr.bf16.mxu0 0
      %328 = vmatpush1.bf16.msra.mxu0 %v318
      %329 = vmatprep.subr.bf16.mxu0 0
      %330 = vmatpush1.bf16.msra.mxu0 %v317
      %331 = vmatprep.subr.bf16.mxu0 0
      %332 = vmatpush1.bf16.msra.mxu0 %v316
      %333 = vmatprep.subr.bf16.mxu0 0
      %334 = vmatpush1.bf16.msra.mxu0 %v315
      %335 = vmatprep.subr.bf16.mxu0 0
      %336 = vmatpush1.bf16.msra.mxu0 %v314
      %337 = vmatprep.subr.bf16.mxu0 0
      %338 = vmatpush1.bf16.msra.mxu0 %v313
      %339 = vmatprep.subr.bf16.mxu0 0
      %340 = vmatpush1.bf16.msra.mxu0 %v312
      %341 = vmatprep.subr.bf16.mxu0 0
      %342 = vmatpush1.bf16.msra.mxu0 %v311
      %343 = vmatprep.subr.bf16.mxu0 0
      %344 = vmatpush2.bf16.msra.mxu0 0
      %345 = vmatprep.subr.bf16.mxu0 0
      %346 = vmatpush2.bf16.msra.mxu0 0
      %347 = vmatprep.subr.bf16.mxu0 0
      %348 = vmatpush2.bf16.msra.mxu0 0
      %349 = vmatprep.subr.bf16.mxu0 0
      %350 = vmatpush2.bf16.msra.mxu0 0
      %351 = vmatprep.subr.bf16.mxu0 0
      %352 = vmatpush2.bf16.msra.mxu0 0
      %353 = vmatprep.subr.bf16.mxu0 0
      %354 = vmatpush2.bf16.msra.mxu0 0
      %355 = vmatprep.subr.bf16.mxu0 0
      %356 = vmatpush2.bf16.msra.mxu0 0
      %357 = vmatprep.subr.bf16.mxu0 0
      %358 = vmatpush2.bf16.msra.mxu0 0
      %359 = vmatprep.mubr.bf16.mxu0 0
      %360 = vmatmul.mubr.bf16.gmra.mxu0 %v262
      %v361 = vpop.f32.mrf.mxu0
      %v362 = vadd.f32 0.0, %v361
      %v363 = vpop.f32.mrf.mxu0
      %v364 = vpop.f32.mrf.mxu0
      %v365 = vpop.f32.mrf.mxu0
      %366 = vdwg.mxu0
      %v367 = vadd.f32 %v261, %v362
      %vm368 = vcmask 523264
      %369 = vst.msk [vmem:[#allocation2] sm:$0xff] %vm368, %v367
      %p370 = scmp.eq.s32.totalorder %s21, 4
      // Predicated region
      $region37: #{forward.7} parent=31 // pred_check
        %p371 = pneg %p370
      $region38: #{forward.7} parent=31 // pred_check_branch
        %373 = sbr.rel (%p371) target = $region40
      $region39: #{forward.7} parent=31 // pred_region
        %v374 = vld [vmem:[#allocation2] sm:$0xff]
        %v375 = vld [vmem:[%s246] sm:$0x1]
        %v377 = vlaneseq
        %v378 = vshrl.u32 %v377, 7
        %v379 = vsub.s32 0, %v378
        %v380 = vrot.slane %v375, %v379
        %v382 = vadd.f32 %v374, %v380
        %v383 = vmax.f32 %v382, 0.0
        %v384 = vpack.c.bf16 %v383, %v383
        %vm385 = vcmask 519168
        %386 = vst.msk [vmem:[%s253] sm:$0xf] %vm385, %v384
      $region40: #{forward.7} parent=31 // pred_fallthru
        _
      %p387 = scmp.lt.s32.totalorder %s19, 0
      %s388 = scalar_select %p387, %s19, 0
      %p389 = scmp.lt.s32.totalorder %s20, 0
      %s390 = scalar_select %p389, %s20, 0
      %s391 = sadd.s32 %s390, %s388
      %s392 = smul.addr %s391, 4
      %s393 = scalar_lea.vmem %s3, %s392
      // Predicated region
      $region41: #{forward.7} parent=31 // pred_check
        %p394 = pneg %p135
      $region42: #{forward.7} parent=31 // pred_check_branch
        %396 = sbr.rel (%p394) target = $region44
      $region43: #{forward.7} parent=31 // pred_region
        _
      $region44: #{forward.7} parent=31 // pred_fallthru
        _
      // Predicated region
      $region45: #{forward.7} parent=31 // pred_check
        %p397 = pneg %p135
      $region46: #{forward.7} parent=31 // pred_check_branch
        %399 = sbr.rel (%p397) target = $region48
      $region47: #{forward.7} parent=31 // pred_region
        %p400 = scmp.lt.s32.totalorder %s19, 0
        %s401 = scalar_select %p400, %s19, 0
        %p402 = scmp.lt.s32.totalorder %s20, 0
        %s403 = scalar_select %p402, %s20, 0
        %s404 = sadd.s32 %s403, %s401
        %s405 = smul.addr %s404, 4
        %s406 = scalar_lea.vmem %s3, %s405
      $region48: #{forward.7} parent=31 // pred_fallthru
        _
    $region32: #{forward.7} parent=5 // pred_fallthru
      _
    %p407 = scmp.le.s32.totalorder 2, %s9
    // Predicated region
    $region49: #{forward.7} parent=5 // pred_check
      %p408 = pneg %p407
    $region50: #{forward.7} parent=5 // pred_check_branch
      %410 = sbr.rel (%p408) target = $region52
    $region51: #{forward.7} parent=5 // pred_region
      %s411 = ssub.s32 %s9, 2
    $region52: #{forward.7} parent=5 // pred_fallthru
      _
  $region6: #{forward.7} parent=0 // loop_footer
    %s13 = sadd.s32 1, %s9
  $region7: #{forward.7} parent=0 // loop_footer_branch
    %8 = sbr.rel target = $region3
  $region8: #{forward.7} parent=0 // loop_exit
    _

// kernel: forward.8
$region0: #{forward.8}
  #allocation0 [shape = 'u32[]', space=smem, size = 0x4, offset = 0x4, fixed_abs, tag = 'smem constant byte address 0x4 - core index']
  #allocation1 [shape = 'u32[144,128]{1,0:T(1,128)}', space=vmem, size = 0x12000, scoped, tag = 'internal scratch']
  #allocation2 [shape = 'f32[8,256]{1,0:T(8,128)}', space=vmem, size = 0x2000, scoped, tag = 'scratch operand']
  %s0 = inlined_call_operand.vmem [shape: bf16[8,128], index: 0, kind: input, shape index: {}]
  %s1 = inlined_call_operand.vmem [shape: bf16[128,512], index: 1, kind: input, shape index: {}]
  %s2 = inlined_call_operand.vmem [shape: f32[1,512], index: 2, kind: input, shape index: {}]
  %s3 = inlined_call_operand.vmem [shape: bf16[8,512], index: 3, kind: output, shape index: {}]
  %s4 = sld [smem:[#allocation0]]
  $region91: #{forward.8} parent=0
    _
  %s6 = ssub.s32 1, %s4
  %s7 = scalar_select 0, %s6, %s4
  $region1: #{forward.8} parent=0
    #allocation3 [shape = 'u8[131072]{0}', space=vmem, size = 0x20000, scoped, tag = 'input window, operand 1']
    loop: start=0, step=1, limit=4
    $region2: #{forward.8} parent=1 // loop_pre_header
      _
    $region3: #{forward.8} parent=1 // loop_header
      %s9 = sphi 0, %s13
      %p10 = scmp.ge.s32.totalorder %s9, 4
      %s16 = sphi 0, %s35
      %s17 = sphi 0, %s31
      %s18 = sphi 0, %s27
      %s19 = sphi 0, %s16
      %s20 = sphi 0, %s17
      %s21 = sphi 0, %s18
      %s22 = sphi 0, %s19
      %s23 = sphi 0, %s20
      %s24 = sphi 0, %s21
      %s40 = sphi 0, %s42
      %s43 = sphi 0, %s40
      %s44 = sphi 0, %s43
      %s60 = sphi 0, %s44
      %s68 = sphi 0, %s70
      %s71 = sphi 0, %s68
      %s72 = sphi 0, %s71
      %s88 = sphi 0, %s72
      %s94 = sphi 0, %s96
      %s97 = sphi 0, %s94
      %s98 = sphi 0, %s97
      %s114 = sphi 0, %s98
      %s122 = sphi 0, %s124
      %s125 = sphi 0, %s122
      %s126 = sphi 0, %s125
      %s142 = sphi 0, %s126
    $region4: #{forward.8} parent=1 // loop_header_branch
      %12 = sbr.rel (%p10) target = $region8
    $region5: #{forward.8} parent=1 // loop_body
      %s14 = ssub.s32 %s9, 1
      %s15 = ssub.s32 %s9, 2
      %s25 = sadd.s32 1, %s18
      %p26 = scmp.ge.s32.totalorder %s25, 1
      %s27 = scalar_select %p26, 0, %s25
      %s28 = sadd.s32 1, %s17
      %s29 = scalar_select %p26, %s28, %s17
      %p30 = scmp.ge.s32.totalorder %s29, 2
      %s31 = scalar_select %p30, 0, %s29
      %s32 = sadd.s32 1, %s16
      %s33 = scalar_select %p30, %s32, %s16
      %p34 = scmp.ge.s32.totalorder %s33, 1
      %s35 = scalar_select %p34, 0, %s33
      %s36 = ssub.s32 %s16, %s35
      %s37 = ssub.s32 %s18, %s27
      %s38 = sor.u32 %s36, %s37
      %p39 = scmp.eq.s32.totalorder %s38, 0
      %s41 = sadd.s32 %s40, 1
      %s42 = scalar_select %p39, %s40, %s41
      %p45 = pneg %p39
      %p46 = scmp.eq.s32.totalorder %s9, 1
      %p47 = por %p45, %p46
      %p48 = scmp.ne.s32.totalorder %s40, %s43
      %p49 = scmp.eq.s32.totalorder %s9, 0
      %p50 = por %p48, %p49
      %p51 = scmp.ne.s32.totalorder %s40, %s43
      %p52 = scmp.eq.s32.totalorder %s14, 1
      %p53 = por %p51, %p52
      %p54 = scmp.ne.s32.totalorder %s43, %s44
      %p55 = scmp.eq.s32.totalorder %s14, 0
      %p56 = por %p54, %p55
      %p57 = scmp.ne.s32.totalorder %s43, %s44
      %p58 = scmp.eq.s32.totalorder %s15, 1
      %p59 = por %p57, %p58
      %p61 = scmp.ne.s32.totalorder %s44, %s60
      %p62 = scmp.eq.s32.totalorder %s15, 0
      %p63 = por %p61, %p62
      %s64 = ssub.s32 %s18, %s27
      %s65 = ssub.s32 %s17, %s31
      %s66 = sor.u32 %s64, %s65
      %p67 = scmp.eq.s32.totalorder %s66, 0
      %s69 = sadd.s32 %s68, 1
      %s70 = scalar_select %p67, %s68, %s69
      %p73 = pneg %p67
      %p74 = scmp.eq.s32.totalorder %s9, 1
      %p75 = por %p73, %p74
      %p76 = scmp.ne.s32.totalorder %s68, %s71
      %p77 = scmp.eq.s32.totalorder %s9, 0
      %p78 = por %p76, %p77
      %p79 = scmp.ne.s32.totalorder %s68, %s71
      %p80 = scmp.eq.s32.totalorder %s14, 1
      %p81 = por %p79, %p80
      %p82 = scmp.ne.s32.totalorder %s71, %s72
      %p83 = scmp.eq.s32.totalorder %s14, 0
      %p84 = por %p82, %p83
      %p85 = scmp.ne.s32.totalorder %s71, %s72
      %p86 = scmp.eq.s32.totalorder %s15, 1
      %p87 = por %p85, %p86
      %p89 = scmp.ne.s32.totalorder %s72, %s88
      %p90 = scmp.eq.s32.totalorder %s15, 0
      %p91 = por %p89, %p90
      %s92 = ssub.s32 %s17, %s31
      %p93 = scmp.eq.s32.totalorder %s92, 0
      %s95 = sadd.s32 %s94, 1
      %s96 = scalar_select %p93, %s94, %s95
      %p99 = pneg %p93
      %p100 = scmp.eq.s32.totalorder %s9, 1
      %p101 = por %p99, %p100
      %p102 = scmp.ne.s32.totalorder %s94, %s97
      %p103 = scmp.eq.s32.totalorder %s9, 0
      %p104 = por %p102, %p103
      %p105 = scmp.ne.s32.totalorder %s94, %s97
      %p106 = scmp.eq.s32.totalorder %s14, 1
      %p107 = por %p105, %p106
      %p108 = scmp.ne.s32.totalorder %s97, %s98
      %p109 = scmp.eq.s32.totalorder %s14, 0
      %p110 = por %p108, %p109
      %p111 = scmp.ne.s32.totalorder %s97, %s98
      %p112 = scmp.eq.s32.totalorder %s15, 1
      %p113 = por %p111, %p112
      %p115 = scmp.ne.s32.totalorder %s98, %s114
      %p116 = scmp.eq.s32.totalorder %s15, 0
      %p117 = por %p115, %p116
      %s118 = ssub.s32 %s16, %s35
      %s119 = ssub.s32 %s17, %s31
      %s120 = sor.u32 %s118, %s119
      %p121 = scmp.eq.s32.totalorder %s120, 0
      %s123 = sadd.s32 %s122, 1
      %s124 = scalar_select %p121, %s122, %s123
      %p127 = pneg %p121
      %p128 = scmp.eq.s32.totalorder %s9, 1
      %p129 = por %p127, %p128
      %p130 = scmp.ne.s32.totalorder %s122, %s125
      %p131 = scmp.eq.s32.totalorder %s9, 0
      %p132 = por %p130, %p131
      %p133 = scmp.ne.s32.totalorder %s122, %s125
      %p134 = scmp.eq.s32.totalorder %s14, 1
      %p135 = por %p133, %p134
      %p136 = scmp.ne.s32.totalorder %s125, %s126
      %p137 = scmp.eq.s32.totalorder %s14, 0
      %p138 = por %p136, %p137
      %p139 = scmp.ne.s32.totalorder %s125, %s126
      %p140 = scmp.eq.s32.totalorder %s15, 1
      %p141 = por %p139, %p140
      %p143 = scmp.ne.s32.totalorder %s126, %s142
      %p144 = scmp.eq.s32.totalorder %s15, 0
      %p145 = por %p143, %p144
      %p146 = scmp.le.s32.totalorder 1, %s9
      %p147 = scmp.lt.s32.totalorder %s9, 3
      %p148 = pnand %p146, %p147
      %p149 = pneg %p148
      // Predicated region
      $region9: #{forward.8} parent=5 // pred_check
        _
      $region10: #{forward.8} parent=5 // pred_check_branch
        %151 = sbr.rel (%p148) target = $region12
      $region11: #{forward.8} parent=5 // pred_region
        %s152 = ssub.s32 %s9, 1
        // Predicated region
        $region13: #{forward.8} parent=11 // pred_check
          %p153 = pneg %p56
        $region14: #{forward.8} parent=11 // pred_check_branch
          %155 = sbr.rel (%p153) target = $region16
        $region15: #{forward.8} parent=11 // pred_region
          %p156 = scmp.lt.s32.totalorder %s19, 0
          %s157 = scalar_select %p156, %s19, 0
          %p158 = scmp.lt.s32.totalorder %s21, 0
          %s159 = scalar_select %p158, %s21, 0
          %s160 = sadd.s32 %s159, %s157
          %s161 = smul.addr %s160, 4
          %s162 = scalar_lea.vmem %s0, %s161
        $region16: #{forward.8} parent=11 // pred_fallthru
          _
      $region12: #{forward.8} parent=5 // pred_fallthru
        _
      %p163 = scmp.lt.s32.totalorder %s9, 2
      // Predicated region
      $region17: #{forward.8} parent=5 // pred_check
        %p164 = pneg %p163
      $region18: #{forward.8} parent=5 // pred_check_branch
        %166 = sbr.rel (%p164) target = $region20
      $region19: #{forward.8} parent=5 // pred_region
        // Predicated region
        $region21: #{forward.8} parent=19 // pred_check
          %p167 = pneg %p78
        $region22: #{forward.8} parent=19 // pred_check_branch
          %169 = sbr.rel (%p167) target = $region24
        $region23: #{forward.8} parent=19 // pred_region
          %s170 = sand.u32 %s68, 1
          %s171 = sand.u32 %s68, 1
          %s172 = smul.addr %s171, 128
          %s173 = scalar_lea.vmem [#allocation3], %s172
          %s174 = smul.u32 16, %s18
          %s175 = smul.u32 2, %s17
          %s176 = smul.addr %s174, 4
          %s177 = sadd.s32 %s175, %s176
          %s178 = smul.addr %s177, 4
          %s179 = scalar_lea.vmem %s1, %s178
          // Predicated region
          $region25: #{forward.8} parent=23 // pred_check
            _
          $region26: #{forward.8} parent=23 // pred_check_branch
            %181 = sbr.rel (0) target = $region28
          $region27: #{forward.8} parent=23 // pred_region
            // Predicated region
            $region29: #{forward.8} parent=27 // pred_check
              _
            $region30: #{forward.8} parent=27 // pred_check_branch
              %183 = sbr.rel (0) target = $region32
            $region31: #{forward.8} parent=27 // pred_region
              // Predicated region
              $region44: #{forward.8} parent=31 // pred_check
                _
              $region45: #{forward.8} parent=31 // pred_check_branch
                %229 = sbr.rel (0) target = $region47
              $region46: #{forward.8} parent=31 // pred_region
                loop: start=0, step=1, limit=1
                $region48: #{forward.8} parent=46 // loop_pre_header
                  _
                $region49: #{forward.8} parent=46 // loop_header
                  %s231 = sphi 0, %s235
                  %p232 = scmp.ge.s32.totalorder %s231, 1
                  %s236 = sphi %s179, %s179
                  %s237 = sphi %s173, %s173
                $region50: #{forward.8} parent=46 // loop_header_branch
                  %234 = sbr.rel (%p232) target = $region54
                $region51: #{forward.8} parent=46 // loop_body
                  %v238 = vld [vmem:[%s236] sm:$0xff]
                  %239 = vst [vmem:[%s237] sm:$0xff] %v238
                  %v240 = vld [vmem:[%s236 + $0x10] sm:$0xff]
                  %241 = vst [vmem:[%s237 + $0x8] sm:$0xff] %v240
                  %v242 = vld [vmem:[%s236 + $0x20] sm:$0xff]
                  %243 = vst [vmem:[%s237 + $0x10] sm:$0xff] %v242
                  %v244 = vld [vmem:[%s236 + $0x30] sm:$0xff]
                  %245 = vst [vmem:[%s237 + $0x18] sm:$0xff] %v244
                  %v246 = vld [vmem:[%s236 + $0x40] sm:$0xff]
                  %247 = vst [vmem:[%s237 + $0x20] sm:$0xff] %v246
                  %v248 = vld [vmem:[%s236 + $0x50] sm:$0xff]
                  %249 = vst [vmem:[%s237 + $0x28] sm:$0xff] %v248
                  %v250 = vld [vmem:[%s236 + $0x60] sm:$0xff]
                  %251 = vst [vmem:[%s237 + $0x30] sm:$0xff] %v250
                  %v252 = vld [vmem:[%s236 + $0x70] sm:$0xff]
                  %253 = vst [vmem:[%s237 + $0x38] sm:$0xff] %v252
                  %v254 = vld [vmem:[%s236 + $0x80] sm:$0xff]
                  %255 = vst [vmem:[%s237 + $0x40] sm:$0xff] %v254
                  %v256 = vld [vmem:[%s236 + $0x90] sm:$0xff]
                  %257 = vst [vmem:[%s237 + $0x48] sm:$0xff] %v256
                  %v258 = vld [vmem:[%s236 + $0xa0] sm:$0xff]
                  %259 = vst [vmem:[%s237 + $0x50] sm:$0xff] %v258
                  %v260 = vld [vmem:[%s236 + $0xb0] sm:$0xff]
                  %261 = vst [vmem:[%s237 + $0x58] sm:$0xff] %v260
                  %v262 = vld [vmem:[%s236 + $0xc0] sm:$0xff]
                  %263 = vst [vmem:[%s237 + $0x60] sm:$0xff] %v262
                  %v264 = vld [vmem:[%s236 + $0xd0] sm:$0xff]
                  %265 = vst [vmem:[%s237 + $0x68] sm:$0xff] %v264
                  %v266 = vld [vmem:[%s236 + $0xe0] sm:$0xff]
                  %267 = vst [vmem:[%s237 + $0x70] sm:$0xff] %v266
                  %v268 = vld [vmem:[%s236 + $0xf0] sm:$0xff]
                  %269 = vst [vmem:[%s237 + $0x78] sm:$0xff] %v268
                $region52: #{forward.8} parent=46 // loop_footer
                  %s235 = sadd.s32 1, %s231
                $region53: #{forward.8} parent=46 // loop_footer_branch
                  %230 = sbr.rel target = $region49
                $region54: #{forward.8} parent=46 // loop_exit
                  _
              $region47: #{forward.8} parent=31 // pred_fallthru
                _
              // Predicated region
              $region55: #{forward.8} parent=31 // pred_check
                _
              $region56: #{forward.8} parent=31 // pred_check_branch
                %271 = sbr.rel target = $region58
              $region57: #{forward.8} parent=31 // pred_region
                _
              $region58: #{forward.8} parent=31 // pred_fallthru
                _
            $region32: #{forward.8} parent=27 // pred_fallthru
              _
            // Predicated region
            $region33: #{forward.8} parent=27 // pred_check
              _
            $region34: #{forward.8} parent=27 // pred_check_branch
              %185 = sbr.rel target = $region36
            $region35: #{forward.8} parent=27 // pred_region
              %s187 = ssub.s32 256, 1
              loop: start=0, step=1, limit=1
              $region37: #{forward.8} parent=35 // loop_pre_header
                _
              $region38: #{forward.8} parent=35 // loop_header
                %s189 = sphi 0, %s193
                %p190 = scmp.ge.s32.totalorder %s189, 1
                %s194 = sphi %s179, %s179
                %s195 = sphi %s173, %s173
              $region39: #{forward.8} parent=35 // loop_header_branch
                %192 = sbr.rel (%p190) target = $region43
              $region40: #{forward.8} parent=35 // loop_body
                %v196 = vld [vmem:[%s194] sm:%s187]
                %197 = vst [vmem:[%s195] sm:%s187] %v196
                %v198 = vld [vmem:[%s194 + $0x10] sm:%s187]
                %199 = vst [vmem:[%s195 + $0x8] sm:%s187] %v198
                %v200 = vld [vmem:[%s194 + $0x20] sm:%s187]
                %201 = vst [vmem:[%s195 + $0x10] sm:%s187] %v200
                %v202 = vld [vmem:[%s194 + $0x30] sm:%s187]
                %203 = vst [vmem:[%s195 + $0x18] sm:%s187] %v202
                %v204 = vld [vmem:[%s194 + $0x40] sm:%s187]
                %205 = vst [vmem:[%s195 + $0x20] sm:%s187] %v204
                %v206 = vld [vmem:[%s194 + $0x50] sm:%s187]
                %207 = vst [vmem:[%s195 + $0x28] sm:%s187] %v206
                %v208 = vld [vmem:[%s194 + $0x60] sm:%s187]
                %209 = vst [vmem:[%s195 + $0x30] sm:%s187] %v208
                %v210 = vld [vmem:[%s194 + $0x70] sm:%s187]
                %211 = vst [vmem:[%s195 + $0x38] sm:%s187] %v210
                %v212 = vld [vmem:[%s194 + $0x80] sm:%s187]
                %213 = vst [vmem:[%s195 + $0x40] sm:%s187] %v212
                %v214 = vld [vmem:[%s194 + $0x90] sm:%s187]
                %215 = vst [vmem:[%s195 + $0x48] sm:%s187] %v214
                %v216 = vld [vmem:[%s194 + $0xa0] sm:%s187]
                %217 = vst [vmem:[%s195 + $0x50] sm:%s187] %v216
                %v218 = vld [vmem:[%s194 + $0xb0] sm:%s187]
                %219 = vst [vmem:[%s195 + $0x58] sm:%s187] %v218
                %v220 = vld [vmem:[%s194 + $0xc0] sm:%s187]
                %221 = vst [vmem:[%s195 + $0x60] sm:%s187] %v220
                %v222 = vld [vmem:[%s194 + $0xd0] sm:%s187]
                %223 = vst [vmem:[%s195 + $0x68] sm:%s187] %v222
                %v224 = vld [vmem:[%s194 + $0xe0] sm:%s187]
                %225 = vst [vmem:[%s195 + $0x70] sm:%s187] %v224
                %v226 = vld [vmem:[%s194 + $0xf0] sm:%s187]
                %227 = vst [vmem:[%s195 + $0x78] sm:%s187] %v226
              $region41: #{forward.8} parent=35 // loop_footer
                %s193 = sadd.s32 1, %s189
              $region42: #{forward.8} parent=35 // loop_footer_branch
                %188 = sbr.rel target = $region38
              $region43: #{forward.8} parent=35 // loop_exit
                _
            $region36: #{forward.8} parent=27 // pred_fallthru
              _
          $region28: #{forward.8} parent=23 // pred_fallthru
            _
          %272 = vnop
        $region24: #{forward.8} parent=19 // pred_fallthru
          _
        // Predicated region
        $region59: #{forward.8} parent=19 // pred_check
          %p273 = pneg %p104
        $region60: #{forward.8} parent=19 // pred_check_branch
          %275 = sbr.rel (%p273) target = $region62
        $region61: #{forward.8} parent=19 // pred_region
          %s276 = smul.u32 2, %s17
          %p277 = scmp.lt.s32.totalorder %s276, 3
          %s278 = scalar_select %p277, %s276, 3
          %s279 = scalar_lea.vmem %s2, %s278
          %s280 = smul.u32 2, %s17
        $region62: #{forward.8} parent=19 // pred_fallthru
          _
      $region20: #{forward.8} parent=5 // pred_fallthru
        _
      %p281 = scmp.le.s32.totalorder 1, %s9
      %p282 = scmp.lt.s32.totalorder %s9, 3
      %p283 = pnand %p281, %p282
      %p284 = pneg %p283
      // Predicated region
      $region63: #{forward.8} parent=5 // pred_check
        _
      $region64: #{forward.8} parent=5 // pred_check_branch
        %286 = sbr.rel (%p283) target = $region66
      $region65: #{forward.8} parent=5 // pred_region
        %s287 = ssub.s32 %s9, 1
        %s288 = sand.u32 %s71, 1
        %s289 = sand.u32 %s71, 1
        %s290 = smul.addr %s289, 128
        %s291 = scalar_lea.vmem [#allocation3], %s290
        // Predicated region
        $region67: #{forward.8} parent=65 // pred_check
          %p292 = pneg %p84
        $region68: #{forward.8} parent=65 // pred_check_branch
          %294 = sbr.rel (%p292) target = $region70
        $region69: #{forward.8} parent=65 // pred_region
          _
        $region70: #{forward.8} parent=65 // pred_fallthru
          _
        %p295 = scmp.lt.s32.totalorder %s19, 0
        %s296 = scalar_select %p295, %s19, 0
        %p297 = scmp.lt.s32.totalorder %s21, 0
        %s298 = scalar_select %p297, %s21, 0
        %s299 = sadd.s32 %s298, %s296
        %s300 = smul.addr %s299, 4
        %s301 = scalar_lea.vmem %s0, %s300
        %p302 = pneg %p56
        %p303 = pneg %p53
        %s304 = sand.u32 %s71, 1
        %s305 = sand.u32 %s71, 1
        %s306 = smul.addr %s305, 128
        %s307 = scalar_lea.vmem [#allocation3], %s306
        %p308 = pneg %p84
        %p309 = pneg %p81
        %s310 = smul.u32 2, %s20
        %p311 = scmp.lt.s32.totalorder %s310, 3
        %s312 = scalar_select %p311, %s310, 3
        %s313 = scalar_lea.vmem %s2, %s312
        %p314 = pneg %p110
        %p315 = pneg %p107
        %p316 = pneg %p138
        %p317 = pneg %p135
        %s318 = smul.u32 2, %s20
        %p319 = scmp.lt.s32.totalorder %s19, 0
        %s320 = scalar_select %p319, %s19, 0
        %p321 = scmp.lt.s32.totalorder %s318, 3
        %s322 = scalar_select %p321, %s318, 3
        %s323 = smul.addr %s320, 4
        %s324 = sadd.s32 %s322, %s323
        %s325 = smul.addr %s324, 4
        %s326 = scalar_lea.vmem %s3, %s325
        %p327 = scmp.lt.s32.totalorder %s19, 0
        %s328 = scalar_select %p327, %s19, 0
        %p329 = scmp.lt.s32.totalorder %s21, 0
        %s330 = scalar_select %p329, %s21, 0
        %s331 = sadd.s32 %s330, %s328
        %s332 = smul.addr %s331, 4
        %s333 = scalar_lea.vmem %s0, %s332
        %s334 = smul.u32 16, %s21
        %s335 = smul.u32 2, %s20
        %s336 = smul.u32 2, %s20
        %p337 = scmp.lt.s32.totalorder %s336, 3
        %s338 = scalar_select %p337, %s336, 3
        %s339 = scalar_lea.vmem %s2, %s338
        %s340 = smul.u32 2, %s20
        %s341 = smul.u32 2, %s20
        %p342 = scmp.lt.s32.totalorder %s19, 0
        %s343 = scalar_select %p342, %s19, 0
        %p344 = scmp.lt.s32.totalorder %s341, 3
        %s345 = scalar_select %p344, %s341, 3
        %s346 = smul.addr %s343, 4
        %s347 = sadd.s32 %s345, %s346
        %s348 = smul.addr %s347, 4
        %s349 = scalar_lea.vmem %s3, %s348
        %s350 = smul.u32 2, %s20
        %p352 = scmp.eq.s32.totalorder %s21, 0
        // Predicated region
        $region71: #{forward.8} parent=65 // pred_check
          %p353 = pneg %p352
        $region72: #{forward.8} parent=65 // pred_check_branch
          %355 = sbr.rel (%p353) target = $region74
        $region73: #{forward.8} parent=65 // pred_region
          %356 = vst [vmem:[#allocation2] sm:$0xff] 0.0
          %357 = vst [vmem:[#allocation2 + $0x8] sm:$0xff] 0.0
        $region74: #{forward.8} parent=65 // pred_fallthru
          _
        %v358 = vld [vmem:[#allocation2] sm:$0xff]
        %v359 = vld [vmem:[#allocation2 + $0x8] sm:$0xff]
        %v360 = vld [vmem:[%s333] sm:$0xf]
        %v361 = vld [vmem:[%s291] sm:$0xff]
        %v362 = vld [vmem:[%s291 + $0x8] sm:$0xff]
        %v363 = vld [vmem:[%s291 + $0x10] sm:$0xff]
        %v364 = vld [vmem:[%s291 + $0x18] sm:$0xff]
        %v365 = vld [vmem:[%s291 + $0x20] sm:$0xff]
        %v366 = vld [vmem:[%s291 + $0x28] sm:$0xff]
        %v367 = vld [vmem:[%s291 + $0x30] sm:$0xff]
        %v368 = vld [vmem:[%s291 + $0x38] sm:$0xff]
        %v369 = vld [vmem:[%s291 + $0x40] sm:$0xff]
        %v370 = vld [vmem:[%s291 + $0x48] sm:$0xff]
        %v371 = vld [vmem:[%s291 + $0x50] sm:$0xff]
        %v372 = vld [vmem:[%s291 + $0x58] sm:$0xff]
        %v373 = vld [vmem:[%s291 + $0x60] sm:$0xff]
        %v374 = vld [vmem:[%s291 + $0x68] sm:$0xff]
        %v375 = vld [vmem:[%s291 + $0x70] sm:$0xff]
        %v376 = vld [vmem:[%s291 + $0x78] sm:$0xff]
        %v393 = vunpack.c.l.b16 %v361
        %v394 = vunpack.c.h.b16 %v361
        %v395 = vunpack.c.l.b16 %v362
        %v396 = vunpack.c.h.b16 %v362
        %v397 = vunpack.c.l.b16 %v363
        %v398 = vunpack.c.h.b16 %v363
        %v399 = vunpack.c.l.b16 %v364
        %v400 = vunpack.c.h.b16 %v364
        %v401 = vunpack.c.l.b16 %v365
        %v402 = vunpack.c.h.b16 %v365
        %v403 = vunpack.c.l.b16 %v366
        %v404 = vunpack.c.h.b16 %v366
        %v405 = vunpack.c.l.b16 %v367
        %v406 = vunpack.c.h.b16 %v367
        %v407 = vunpack.c.l.b16 %v368
        %v408 = vunpack.c.h.b16 %v368
        %v409 = vunpack.c.l.b16 %v369
        %v410 = vunpack.c.h.b16 %v369
        %v411 = vunpack.c.l.b16 %v370
        %v412 = vunpack.c.h.b16 %v370
        %v413 = vunpack.c.l.b16 %v371
        %v414 = vunpack.c.h.b16 %v371
        %v415 = vunpack.c.l.b16 %v372
        %v416 = vunpack.c.h.b16 %v372
        %v417 = vunpack.c.l.b16 %v373
        %v418 = vunpack.c.h.b16 %v373
        %v419 = vunpack.c.l.b16 %v374
        %v420 = vunpack.c.h.b16 %v374
        %v421 = vunpack.c.l.b16 %v375
        %v422 = vunpack.c.h.b16 %v375
        %v423 = vunpack.c.l.b16 %v376
        %v424 = vunpack.c.h.b16 %v376
        %v425 = vpack.c.b16 %v395, %v393
        %v426 = vpack.c.b16 %v396, %v394
        %v427 = vpack.c.b16 %v399, %v397
        %v428 = vpack.c.b16 %v400, %v398
        %v429 = vpack.c.b16 %v403, %v401
        %v430 = vpack.c.b16 %v404, %v402
        %v431 = vpack.c.b16 %v407, %v405
        %v432 = vpack.c.b16 %v408, %v406
        %v433 = vpack.c.b16 %v411, %v409
        %v434 = vpack.c.b16 %v412, %v410
        %v435 = vpack.c.b16 %v415, %v413
        %v436 = vpack.c.b16 %v416, %v414
        %v437 = vpack.c.b16 %v419, %v417
        %v438 = vpack.c.b16 %v420, %v418
        %v439 = vpack.c.b16 %v423, %v421
        %v440 = vpack.c.b16 %v424, %v422
        %457 = vmatprep.subr.bf16.mxu0 %v440
        %458 = vmatpush1.bf16.msra.mxu0 %v439
        %459 = vmatprep.subr.bf16.mxu0 %v438
        %460 = vmatpush1.bf16.msra.mxu0 %v437
        %461 = vmatprep.subr.bf16.mxu0 %v436
        %462 = vmatpush1.bf16.msra.mxu0 %v435
        %463 = vmatprep.subr.bf16.mxu0 %v434
        %464 = vmatpush1.bf16.msra.mxu0 %v433
        %465 = vmatprep.subr.bf16.mxu0 %v432
        %466 = vmatpush1.bf16.msra.mxu0 %v431
        %467 = vmatprep.subr.bf16.mxu0 %v430
        %468 = vmatpush1.bf16.msra.mxu0 %v429
        %469 = vmatprep.subr.bf16.mxu0 %v428
        %470 = vmatpush1.bf16.msra.mxu0 %v427
        %471 = vmatprep.subr.bf16.mxu0 %v426
        %472 = vmatpush1.bf16.msra.mxu0 %v425
        %473 = vmatprep.subr.bf16.mxu0 0
        %474 = vmatpush2.bf16.msra.mxu0 0
        %475 = vmatprep.subr.bf16.mxu0 0
        %476 = vmatpush2.bf16.msra.mxu0 0
        %477 = vmatprep.subr.bf16.mxu0 0
        %478 = vmatpush2.bf16.msra.mxu0 0
        %479 = vmatprep.subr.bf16.mxu0 0
        %480 = vmatpush2.bf16.msra.mxu0 0
        %481 = vmatprep.subr.bf16.mxu0 0
        %482 = vmatpush2.bf16.msra.mxu0 0
        %483 = vmatprep.subr.bf16.mxu0 0
        %484 = vmatpush2.bf16.msra.mxu0 0
        %485 = vmatprep.subr.bf16.mxu0 0
        %486 = vmatpush2.bf16.msra.mxu0 0
        %487 = vmatprep.subr.bf16.mxu0 0
        %488 = vmatpush2.bf16.msra.mxu0 0
        %489 = vmatprep.mubr.bf16.mxu0 0
        %490 = vmatmul.mubr.bf16.gmra.mxu0 %v360
        %v491 = vpop.f32.mrf.mxu0
        %v492 = vadd.f32 0.0, %v491
        %v493 = vpop.f32.mrf.mxu0
        %v494 = vadd.f32 0.0, %v493
        %v495 = vpop.f32.mrf.mxu0
        %v496 = vpop.f32.mrf.mxu0
        %497 = vdwg.mxu0
        %v498 = vadd.f32 %v358, %v492
        %v499 = vadd.f32 %v359, %v494
        %500 = vst [vmem:[#allocation2] sm:$0xff] %v498
        %501 = vst [vmem:[#allocation2 + $0x8] sm:$0xff] %v499
        // Predicated region
        $region75: #{forward.8} parent=65 // pred_check
          %p502 = pneg %p352
        $region76: #{forward.8} parent=65 // pred_check_branch
          %504 = sbr.rel (%p502) target = $region78
        $region77: #{forward.8} parent=65 // pred_region
          %v505 = vld [vmem:[#allocation2] sm:$0xff]
          %v506 = vld [vmem:[#allocation2 + $0x8] sm:$0xff]
          %v507 = vld [vmem:[%s339] sm:$0x3]
          %v509 = vlaneseq
          %v510 = vshrl.u32 %v509, 7
          %v511 = vsub.s32 0, %v510
          %v512 = vrot.slane %v507, %v511
          %v513 = vlaneseq
          %v514 = vshrl.u32 %v513, 7
          %v515 = vsub.s32 1, %v514
          %v516 = vrot.slane %v507, %v515
          %v519 = vadd.f32 %v505, %v512
          %v520 = vadd.f32 %v506, %v516
          %v521 = vmax.f32 %v519, 0.0
          %v522 = vmax.f32 %v520, 0.0
          %v523 = vpack.c.bf16 %v521, %v521
          %v524 = vpack.c.bf16 %v522, %v522
          %v527 = vunpack.c.l.b16 %v523
          %v528 = vunpack.c.l.b16 %v524
          %v529 = vpack.c.b16 %v528, %v527
          %531 = vst [vmem:[%s349] sm:$0xff] %v529
        $region78: #{forward.8} parent=65 // pred_fallthru
          _
        %s532 = smul.u32 2, %s20
        %p533 = scmp.lt.s32.totalorder %s19, 0
        %s534 = scalar_select %p533, %s19, 0
        %p535 = scmp.lt.s32.totalorder %s532, 3
        %s536 = scalar_select %p535, %s532, 3
        %s537 = smul.addr %s534, 4
        %s538 = sadd.s32 %s536, %s537
        %s539 = smul.addr %s538, 4
        %s540 = scalar_lea.vmem %s3, %s539
        // Predicated region
        $region79: #{forward.8} parent=65 // pred_check
          %p541 = pneg %p135
        $region80: #{forward.8} parent=65 // pred_check_branch
          %543 = sbr.rel (%p541) target = $region82
        $region81: #{forward.8} parent=65 // pred_region
          %s544 = smul.u32 2, %s20
        $region82: #{forward.8} parent=65 // pred_fallthru
          _
      $region66: #{forward.8} parent=5 // pred_fallthru
        _
      %p545 = scmp.le.s32.totalorder 2, %s9
      // Predicated region
      $region83: #{forward.8} parent=5 // pred_check
        %p546 = pneg %p545
      $region84: #{forward.8} parent=5 // pred_check_branch
        %548 = sbr.rel (%p546) target = $region86
      $region85: #{forward.8} parent=5 // pred_region
        %s549 = ssub.s32 %s9, 2
        // Predicated region
        $region87: #{forward.8} parent=85 // pred_check
          %p550 = pneg %p141
        $region88: #{forward.8} parent=85 // pred_check_branch
          %552 = sbr.rel (%p550) target = $region90
        $region89: #{forward.8} parent=85 // pred_region
          %s553 = smul.u32 2, %s23
          %p554 = scmp.lt.s32.totalorder %s22, 0
          %s555 = scalar_select %p554, %s22, 0
          %p556 = scmp.lt.s32.totalorder %s553, 3
          %s557 = scalar_select %p556, %s553, 3
          %s558 = smul.addr %s555, 4
          %s559 = sadd.s32 %s557, %s558
          %s560 = smul.addr %s559, 4
          %s561 = scalar_lea.vmem %s3, %s560
        $region90: #{forward.8} parent=85 // pred_fallthru
          _
      $region86: #{forward.8} parent=5 // pred_fallthru
        _
    $region6: #{forward.8} parent=1 // loop_footer
      %s13 = sadd.s32 1, %s9
    $region7: #{forward.8} parent=1 // loop_footer_branch
      %8 = sbr.rel target = $region3
    $region8: #{forward.8} parent=1 // loop_exit
      _

// kernel: forward.9
$region0: #{forward.9}
  #allocation0 [shape = 'u32[]', space=smem, size = 0x4, offset = 0x4, fixed_abs, tag = 'smem constant byte address 0x4 - core index']
  #allocation1 [shape = 'u32[144,128]{1,0:T(1,128)}', space=vmem, size = 0x12000, scoped, tag = 'internal scratch']
  #allocation2 [shape = 'f32[8,128]{1,0:T(8,128)}', space=vmem, size = 0x1000, scoped, tag = 'scratch operand']
  %s0 = inlined_call_operand.vmem [shape: bf16[8,512], index: 0, kind: input, shape index: {}]
  %s1 = inlined_call_operand.vmem [shape: bf16[512,128], index: 1, kind: input, shape index: {}]
  %s2 = inlined_call_operand.vmem [shape: f32[1,128], index: 2, kind: input, shape index: {}]
  %s3 = inlined_call_operand.vmem [shape: f32[8,128], index: 3, kind: output, shape index: {}]
  %s4 = sld [smem:[#allocation0]]
  $region30: #{forward.9} parent=0
    _
  %s6 = ssub.s32 1, %s4
  %s7 = scalar_select 0, %s6, %s4
  // Predicated region
  $region2: #{forward.9} parent=0 // pred_check
    _
  $region3: #{forward.9} parent=0 // pred_check_branch
    %9 = sbr.rel (0) target = $region5
  $region4: #{forward.9} parent=0 // pred_region
    _
  $region5: #{forward.9} parent=0 // pred_fallthru
    _
  // Predicated region
  $region6: #{forward.9} parent=0 // pred_check
    _
  $region7: #{forward.9} parent=0 // pred_check_branch
    %11 = sbr.rel (0) target = $region9
  $region8: #{forward.9} parent=0 // pred_region
    _
  $region9: #{forward.9} parent=0 // pred_fallthru
    _
  // Predicated region
  $region10: #{forward.9} parent=0 // pred_check
    _
  $region11: #{forward.9} parent=0 // pred_check_branch
    %13 = sbr.rel (0) target = $region13
  $region12: #{forward.9} parent=0 // pred_region
    _
  $region13: #{forward.9} parent=0 // pred_fallthru
    _
  %p15 = scmp.eq.s32.totalorder 0, 0
  // Predicated region
  $region14: #{forward.9} parent=0 // pred_check
    %p16 = pneg %p15
  $region15: #{forward.9} parent=0 // pred_check_branch
    %18 = sbr.rel (%p16) target = $region17
  $region16: #{forward.9} parent=0 // pred_region
    %19 = vst [vmem:[#allocation2] sm:$0xff] 0.0
  $region17: #{forward.9} parent=0 // pred_fallthru
    _
  %v20 = vld [vmem:[#allocation2] sm:$0xff]
  %v21 = vld [vmem:[%s0] sm:$0xff]
  %v22 = vld [vmem:[%s0 + $0x8] sm:$0xff]
  %v23 = vld [vmem:[%s1] sm:$0xf]
  %v24 = vld [vmem:[%s1 + $0x4] sm:$0xf]
  %v25 = vld [vmem:[%s1 + $0x8] sm:$0xf]
  %v26 = vld [vmem:[%s1 + $0xc] sm:$0xf]
  %v27 = vld [vmem:[%s1 + $0x10] sm:$0xf]
  %v28 = vld [vmem:[%s1 + $0x14] sm:$0xf]
  %v29 = vld [vmem:[%s1 + $0x18] sm:$0xf]
  %v30 = vld [vmem:[%s1 + $0x1c] sm:$0xf]
  %v31 = vld [vmem:[%s1 + $0x20] sm:$0xf]
  %v32 = vld [vmem:[%s1 + $0x24] sm:$0xf]
  %v33 = vld [vmem:[%s1 + $0x28] sm:$0xf]
  %v34 = vld [vmem:[%s1 + $0x2c] sm:$0xf]
  %v35 = vld [vmem:[%s1 + $0x30] sm:$0xf]
  %v36 = vld [vmem:[%s1 + $0x34] sm:$0xf]
  %v37 = vld [vmem:[%s1 + $0x38] sm:$0xf]
  %v38 = vld [vmem:[%s1 + $0x3c] sm:$0xf]
  %v39 = vld [vmem:[%s1 + $0x40] sm:$0xf]
  %v40 = vld [vmem:[%s1 + $0x44] sm:$0xf]
  %v41 = vld [vmem:[%s1 + $0x48] sm:$0xf]
  %v42 = vld [vmem:[%s1 + $0x4c] sm:$0xf]
  %v43 = vld [vmem:[%s1 + $0x50] sm:$0xf]
  %v44 = vld [vmem:[%s1 + $0x54] sm:$0xf]
  %v45 = vld [vmem:[%s1 + $0x58] sm:$0xf]
  %v46 = vld [vmem:[%s1 + $0x5c] sm:$0xf]
  %v47 = vld [vmem:[%s1 + $0x60] sm:$0xf]
  %v48 = vld [vmem:[%s1 + $0x64] sm:$0xf]
  %v49 = vld [vmem:[%s1 + $0x68] sm:$0xf]
  %v50 = vld [vmem:[%s1 + $0x6c] sm:$0xf]
  %v51 = vld [vmem:[%s1 + $0x70] sm:$0xf]
  %v52 = vld [vmem:[%s1 + $0x74] sm:$0xf]
  %v53 = vld [vmem:[%s1 + $0x78] sm:$0xf]
  %v54 = vld [vmem:[%s1 + $0x7c] sm:$0xf]
  %v55 = vld [vmem:[%s1 + $0x80] sm:$0xf]
  %v56 = vld [vmem:[%s1 + $0x84] sm:$0xf]
  %v57 = vld [vmem:[%s1 + $0x88] sm:$0xf]
  %v58 = vld [vmem:[%s1 + $0x8c] sm:$0xf]
  %v59 = vld [vmem:[%s1 + $0x90] sm:$0xf]
  %v60 = vld [vmem:[%s1 + $0x94] sm:$0xf]
  %v61 = vld [vmem:[%s1 + $0x98] sm:$0xf]
  %v62 = vld [vmem:[%s1 + $0x9c] sm:$0xf]
  %v63 = vld [vmem:[%s1 + $0xa0] sm:$0xf]
  %v64 = vld [vmem:[%s1 + $0xa4] sm:$0xf]
  %v65 = vld [vmem:[%s1 + $0xa8] sm:$0xf]
  %v66 = vld [vmem:[%s1 + $0xac] sm:$0xf]
  %v67 = vld [vmem:[%s1 + $0xb0] sm:$0xf]
  %v68 = vld [vmem:[%s1 + $0xb4] sm:$0xf]
  %v69 = vld [vmem:[%s1 + $0xb8] sm:$0xf]
  %v70 = vld [vmem:[%s1 + $0xbc] sm:$0xf]
  %v71 = vld [vmem:[%s1 + $0xc0] sm:$0xf]
  %v72 = vld [vmem:[%s1 + $0xc4] sm:$0xf]
  %v73 = vld [vmem:[%s1 + $0xc8] sm:$0xf]
  %v74 = vld [vmem:[%s1 + $0xcc] sm:$0xf]
  %v75 = vld [vmem:[%s1 + $0xd0] sm:$0xf]
  %v76 = vld [vmem:[%s1 + $0xd4] sm:$0xf]
  %v77 = vld [vmem:[%s1 + $0xd8] sm:$0xf]
  %v78 = vld [vmem:[%s1 + $0xdc] sm:$0xf]
  %v79 = vld [vmem:[%s1 + $0xe0] sm:$0xf]
  %v80 = vld [vmem:[%s1 + $0xe4] sm:$0xf]
  %v81 = vld [vmem:[%s1 + $0xe8] sm:$0xf]
  %v82 = vld [vmem:[%s1 + $0xec] sm:$0xf]
  %v83 = vld [vmem:[%s1 + $0xf0] sm:$0xf]
  %v84 = vld [vmem:[%s1 + $0xf4] sm:$0xf]
  %v85 = vld [vmem:[%s1 + $0xf8] sm:$0xf]
  %v86 = vld [vmem:[%s1 + $0xfc] sm:$0xf]
  %v89 = vunpack.c.l.b16 %v21
  %v90 = vunpack.c.h.b16 %v21
  %v91 = vunpack.c.l.b16 %v22
  %v92 = vunpack.c.h.b16 %v22
  %v93 = vpack.c.b16 %v89, %v89
  %v94 = vpack.c.b16 %v90, %v90
  %v95 = vpack.c.b16 %v91, %v91
  %v96 = vpack.c.b16 %v92, %v92
  %v165 = vunpack.c.l.b16 %v23
  %v166 = vunpack.c.l.b16 %v24
  %v167 = vunpack.c.l.b16 %v25
  %v168 = vunpack.c.l.b16 %v26
  %v169 = vunpack.c.l.b16 %v27
  %v170 = vunpack.c.l.b16 %v28
  %v171 = vunpack.c.l.b16 %v29
  %v172 = vunpack.c.l.b16 %v30
  %v173 = vunpack.c.l.b16 %v31
  %v174 = vunpack.c.l.b16 %v32
  %v175 = vunpack.c.l.b16 %v33
  %v176 = vunpack.c.l.b16 %v34
  %v177 = vunpack.c.l.b16 %v35
  %v178 = vunpack.c.l.b16 %v36
  %v179 = vunpack.c.l.b16 %v37
  %v180 = vunpack.c.l.b16 %v38
  %v181 = vunpack.c.l.b16 %v39
  %v182 = vunpack.c.l.b16 %v40
  %v183 = vunpack.c.l.b16 %v41
  %v184 = vunpack.c.l.b16 %v42
  %v185 = vunpack.c.l.b16 %v43
  %v186 = vunpack.c.l.b16 %v44
  %v187 = vunpack.c.l.b16 %v45
  %v188 = vunpack.c.l.b16 %v46
  %v189 = vunpack.c.l.b16 %v47
  %v190 = vunpack.c.l.b16 %v48
  %v191 = vunpack.c.l.b16 %v49
  %v192 = vunpack.c.l.b16 %v50
  %v193 = vunpack.c.l.b16 %v51
  %v194 = vunpack.c.l.b16 %v52
  %v195 = vunpack.c.l.b16 %v53
  %v196 = vunpack.c.l.b16 %v54
  %v197 = vunpack.c.l.b16 %v55
  %v198 = vunpack.c.l.b16 %v56
  %v199 = vunpack.c.l.b16 %v57
  %v200 = vunpack.c.l.b16 %v58
  %v201 = vunpack.c.l.b16 %v59
  %v202 = vunpack.c.l.b16 %v60
  %v203 = vunpack.c.l.b16 %v61
  %v204 = vunpack.c.l.b16 %v62
  %v205 = vunpack.c.l.b16 %v63
  %v206 = vunpack.c.l.b16 %v64
  %v207 = vunpack.c.l.b16 %v65
  %v208 = vunpack.c.l.b16 %v66
  %v209 = vunpack.c.l.b16 %v67
  %v210 = vunpack.c.l.b16 %v68
  %v211 = vunpack.c.l.b16 %v69
  %v212 = vunpack.c.l.b16 %v70
  %v213 = vunpack.c.l.b16 %v71
  %v214 = vunpack.c.l.b16 %v72
  %v215 = vunpack.c.l.b16 %v73
  %v216 = vunpack.c.l.b16 %v74
  %v217 = vunpack.c.l.b16 %v75
  %v218 = vunpack.c.l.b16 %v76
  %v219 = vunpack.c.l.b16 %v77
  %v220 = vunpack.c.l.b16 %v78
  %v221 = vunpack.c.l.b16 %v79
  %v222 = vunpack.c.l.b16 %v80
  %v223 = vunpack.c.l.b16 %v81
  %v224 = vunpack.c.l.b16 %v82
  %v225 = vunpack.c.l.b16 %v83
  %v226 = vunpack.c.l.b16 %v84
  %v227 = vunpack.c.l.b16 %v85
  %v228 = vunpack.c.l.b16 %v86
  %v229 = vpack.c.b16 %v166, %v165
  %v230 = vpack.c.b16 %v168, %v167
  %v231 = vpack.c.b16 %v170, %v169
  %v232 = vpack.c.b16 %v172, %v171
  %v233 = vpack.c.b16 %v174, %v173
  %v234 = vpack.c.b16 %v176, %v175
  %v235 = vpack.c.b16 %v178, %v177
  %v236 = vpack.c.b16 %v180, %v179
  %v237 = vpack.c.b16 %v182, %v181
  %v238 = vpack.c.b16 %v184, %v183
  %v239 = vpack.c.b16 %v186, %v185
  %v240 = vpack.c.b16 %v188, %v187
  %v241 = vpack.c.b16 %v190, %v189
  %v242 = vpack.c.b16 %v192, %v191
  %v243 = vpack.c.b16 %v194, %v193
  %v244 = vpack.c.b16 %v196, %v195
  %v245 = vpack.c.b16 %v198, %v197
  %v246 = vpack.c.b16 %v200, %v199
  %v247 = vpack.c.b16 %v202, %v201
  %v248 = vpack.c.b16 %v204, %v203
  %v249 = vpack.c.b16 %v206, %v205
  %v250 = vpack.c.b16 %v208, %v207
  %v251 = vpack.c.b16 %v210, %v209
  %v252 = vpack.c.b16 %v212, %v211
  %v253 = vpack.c.b16 %v214, %v213
  %v254 = vpack.c.b16 %v216, %v215
  %v255 = vpack.c.b16 %v218, %v217
  %v256 = vpack.c.b16 %v220, %v219
  %v257 = vpack.c.b16 %v222, %v221
  %v258 = vpack.c.b16 %v224, %v223
  %v259 = vpack.c.b16 %v226, %v225
  %v260 = vpack.c.b16 %v228, %v227
  %293 = vmatprep.subr.bf16.mxu0 0
  %294 = vmatpush1.bf16.msra.mxu0 %v236
  %295 = vmatprep.subr.bf16.mxu0 0
  %296 = vmatpush1.bf16.msra.mxu0 %v235
  %297 = vmatprep.subr.bf16.mxu0 0
  %298 = vmatpush1.bf16.msra.mxu0 %v234
  %299 = vmatprep.subr.bf16.mxu0 0
  %300 = vmatpush1.bf16.msra.mxu0 %v233
  %301 = vmatprep.subr.bf16.mxu0 0
  %302 = vmatpush1.bf16.msra.mxu0 %v232
  %303 = vmatprep.subr.bf16.mxu0 0
  %304 = vmatpush1.bf16.msra.mxu0 %v231
  %305 = vmatprep.subr.bf16.mxu0 0
  %306 = vmatpush1.bf16.msra.mxu0 %v230
  %307 = vmatprep.subr.bf16.mxu0 0
  %308 = vmatpush1.bf16.msra.mxu0 %v229
  %309 = vmatprep.subr.bf16.mxu0 0
  %310 = vmatpush2.bf16.msra.mxu0 %v244
  %311 = vmatprep.subr.bf16.mxu0 0
  %312 = vmatpush2.bf16.msra.mxu0 %v243
  %313 = vmatprep.subr.bf16.mxu0 0
  %314 = vmatpush2.bf16.msra.mxu0 %v242
  %315 = vmatprep.subr.bf16.mxu0 0
  %316 = vmatpush2.bf16.msra.mxu0 %v241
  %317 = vmatprep.subr.bf16.mxu0 0
  %318 = vmatpush2.bf16.msra.mxu0 %v240
  %319 = vmatprep.subr.bf16.mxu0 0
  %320 = vmatpush2.bf16.msra.mxu0 %v239
  %321 = vmatprep.subr.bf16.mxu0 0
  %322 = vmatpush2.bf16.msra.mxu0 %v238
  %323 = vmatprep.subr.bf16.mxu0 0
  %324 = vmatpush2.bf16.msra.mxu0 %v237
  %325 = vmatprep.mubr.bf16.mxu0 %v94
  %326 = vmatmul.mubr.bf16.gmra.mxu0 %v93
  %v327 = vpop.f32.mrf.mxu0
  %v328 = vadd.f32 0.0, %v327
  %v329 = vpop.f32.mrf.mxu0
  %v330 = vpop.f32.mrf.mxu0
  %v331 = vpop.f32.mrf.mxu0
  %332 = vdwg.mxu0
  %333 = vmatprep.subr.bf16.mxu0 0
  %334 = vmatpush1.bf16.msra.mxu0 %v252
  %335 = vmatprep.subr.bf16.mxu0 0
  %336 = vmatpush1.bf16.msra.mxu0 %v251
  %337 = vmatprep.subr.bf16.mxu0 0
  %338 = vmatpush1.bf16.msra.mxu0 %v250
  %339 = vmatprep.subr.bf16.mxu0 0
  %340 = vmatpush1.bf16.msra.mxu0 %v249
  %341 = vmatprep.subr.bf16.mxu0 0
  %342 = vmatpush1.bf16.msra.mxu0 %v248
  %343 = vmatprep.subr.bf16.mxu0 0
  %344 = vmatpush1.bf16.msra.mxu0 %v247
  %345 = vmatprep.subr.bf16.mxu0 0
  %346 = vmatpush1.bf16.msra.mxu0 %v246
  %347 = vmatprep.subr.bf16.mxu0 0
  %348 = vmatpush1.bf16.msra.mxu0 %v245
  %349 = vmatprep.subr.bf16.mxu0 0
  %350 = vmatpush2.bf16.msra.mxu0 %v260
  %351 = vmatprep.subr.bf16.mxu0 0
  %352 = vmatpush2.bf16.msra.mxu0 %v259
  %353 = vmatprep.subr.bf16.mxu0 0
  %354 = vmatpush2.bf16.msra.mxu0 %v258
  %355 = vmatprep.subr.bf16.mxu0 0
  %356 = vmatpush2.bf16.msra.mxu0 %v257
  %357 = vmatprep.subr.bf16.mxu0 0
  %358 = vmatpush2.bf16.msra.mxu0 %v256
  %359 = vmatprep.subr.bf16.mxu0 0
  %360 = vmatpush2.bf16.msra.mxu0 %v255
  %361 = vmatprep.subr.bf16.mxu0 0
  %362 = vmatpush2.bf16.msra.mxu0 %v254
  %363 = vmatprep.subr.bf16.mxu0 0
  %364 = vmatpush2.bf16.msra.mxu0 %v253
  %365 = vmatprep.mubr.bf16.mxu0 %v96
  %366 = vmatmul.mubr.bf16.gmra.mxu0 %v95
  %v367 = vpop.f32.mrf.mxu0
  %v368 = vadd.f32 %v328, %v367
  %v369 = vpop.f32.mrf.mxu0
  %v370 = vpop.f32.mrf.mxu0
  %v371 = vpop.f32.mrf.mxu0
  %372 = vdwg.mxu0
  %v373 = vadd.f32 %v20, %v368
  %374 = vst [vmem:[#allocation2] sm:$0xff] %v373
  // Predicated region
  $region18: #{forward.9} parent=0 // pred_check
    %p375 = pneg %p15
  $region19: #{forward.9} parent=0 // pred_check_branch
    %377 = sbr.rel (%p375) target = $region21
  $region20: #{forward.9} parent=0 // pred_region
    %v378 = vld [vmem:[#allocation2] sm:$0xff]
    %v379 = vld [vmem:[%s2] sm:$0x1]
    %v381 = vlaneseq
    %v382 = vshrl.u32 %v381, 7
    %v383 = vsub.s32 0, %v382
    %v384 = vrot.slane %v379, %v383
    %v386 = vadd.f32 %v378, %v384
    %387 = vst [vmem:[%s3] sm:$0xff] %v386
  $region21: #{forward.9} parent=0 // pred_fallthru
    _
  // Predicated region
  $region22: #{forward.9} parent=0 // pred_check
    _
  $region23: #{forward.9} parent=0 // pred_check_branch
    %389 = sbr.rel (0) target = $region25
  $region24: #{forward.9} parent=0 // pred_region
    _
  $region25: #{forward.9} parent=0 // pred_fallthru
    _
  // Predicated region
  $region26: #{forward.9} parent=0 // pred_check
    _
  $region27: #{forward.9} parent=0 // pred_check_branch
    %391 = sbr.rel (0) target = $region29
  $region28: #{forward.9} parent=0 // pred_region
    _
  $region29: #{forward.9} parent=0 // pred_fallthru
    _

</llo_original>
